<compile_context>
chip_gen: v7x
topology: tpu7x:2x2x1
jax: 0.10.0
libtpu: 0.0.40
codegen_flags: <defaults>
</compile_context>

<pallas_src>
import functools
import math

import jax
import jax.numpy as jnp
from jax import lax
from jax.experimental import pallas as pl
from jax.experimental.pallas import tpu as pltpu


# ----------------------------- fused Pallas kernel ---------------------------

def _decoder_kernel(x_ref, w3_ref, w1_ref, *rest, plan, nb, t_in, c_last,
                    mxu_dtype):
    """Whole decoder forward for `nb` batch elements; activations stay in
    registers/VMEM, laid out (C, nb*L) with batch folded into the lane dim."""
    n_up = sum(1 for op in plan if op[0] == "up")
    u_refs = rest[:n_up]
    out_ref = rest[n_up]

    mask_cache = {}   # (shape, off, L) -> bool mask (built once per trace)
    ones_cache = {}   # n -> (1, n) ones row for the bias-fold matmul

    def seg_shift(x, off, L):
        # result[:, b*L + j] = x[:, b*L + j + off] if 0 <= j+off < L else 0
        # (conv zero padding), for every batch segment b of length L along the
        # lane dim.  One circular lane roll (XLU) + one select (VPU); no VMEM
        # scratch, no partial stores.  Correct for any |off| (>=L -> zero tap).
        if off == 0:
            return x
        n = x.shape[-1]
        rolled = pltpu.roll(x, (-off) % n, axis=1)  # rolled[j] = x[(j+off)%n]
        key = (x.shape, off, L)
        if key not in mask_cache:
            lane = lax.broadcasted_iota(jnp.int32, x.shape, 1)
            jloc = lane % L                           # position within segment
            mask_cache[key] = (jloc + off >= 0) & (jloc + off < L)
        return jnp.where(mask_cache[key], rolled, 0.0)

    def ones_row(n):
        if n not in ones_cache:
            ones_cache[n] = jnp.ones((1, n), jnp.float32)
        return ones_cache[n]

    def conv(x, w_pack_ref, idx, K, dil, pad, L, relu_in, relu_out, residual,
             c_in):
        n = x.shape[-1]
        if relu_in:                     # pre-activation, hoisted out of taps
            x = jnp.maximum(x, 0.0)
        if K == 1:
            taps = [x]
        else:
            taps = [seg_shift(x, k * dil - pad, L) for k in range(K)]
        # Bias folded into the matmul: ones row x bias column.
        stacked = jnp.concatenate(taps + [ones_row(n)], axis=0)  # (K*c_in+1,n)
        w = w_pack_ref[idx][:, 0:K * c_in + 1]        # (c_max, K*c_in+1)
        y = jnp.dot(w, stacked.astype(mxu_dtype),
                    preferred_element_type=jnp.float32)           # f32 accum
        if residual is not None:
            y = y + residual
        if relu_out:
            y = jnp.maximum(y, 0.0)
        return y

    # (nb, C, T) input block -> lane-dense (C, nb*T); batch-major segments.
    x = jnp.concatenate([x_ref[b] for b in range(nb)], axis=-1)
    x = x.astype(jnp.float32)

    L = t_in
    ui = 0
    for op in plan:
        if op[0] == "conv":
            _, K, idx, dil, pad, relu_in, relu_out, c_in = op
            wref = w3_ref if K == 3 else w1_ref
            x = conv(x, wref, idx, K, dil, pad, L, relu_in, relu_out, None,
                     c_in)
        elif op[0] == "res":            # pre-act ResConv1DBlock (norm=None)
            _, i3, i1, dil, c = op
            h = conv(x, w3_ref, i3, 3, dil, dil, L, True, False, None, c)
            x = conv(h, w1_ref, i1, 1, 1, 0, L, True, False, x, c)
        else:                           # ("up",): nearest x2 via host matrix
            x = jnp.dot(x.astype(mxu_dtype), u_refs[ui][...],
                        preferred_element_type=jnp.float32)
            ui += 1
            L *= 2

    out_ref[...] = x[0:c_last, :].astype(out_ref.dtype)


# --------------------------------- wrapper -----------------------------------

def decoder_forward(params, x, *, mxu_dtype=jnp.bfloat16):
    """x: (N, output_emb_width, T) -> (N, input_emb_width, T * 2**down_t)."""
    convs = params["convs"]
    program = params["program"]
    N, c_in0, T = x.shape
    down_t = sum(1 for op in program if op[0] == "up")
    T_out = T * (2 ** down_t)
    c_last = convs[-1]["w"].shape[0]
    c_max = max(c["w"].shape[0] for c in convs)

    # Batch-in-lanes sizing: lane-dense (>=128) blocks at the output stage
    # while keeping >=2 parallel grid steps (v7x megacore) when N allows.
    nb = max(1, min(pl.cdiv(128, T_out), max(1, N // 2)))
    n_pad = pl.cdiv(N, nb) * nb
    xin = x
    if n_pad != N:
        xin = jnp.concatenate(
            [x, jnp.zeros((n_pad - N, c_in0, T), x.dtype)], axis=0)
    grid = (n_pad // nb,)

    # Host weight prep: (C_out, C_in, K) -> (C_out, K*C_in) (row k*C_in+ci)
    # + bias column, zero-padded to (c_max, W*) and packed into two stacked
    # operands (all K=3 convs / all K=1 convs), cast to the MXU operand dtype.
    c_in3 = [c["w"].shape[1] for c in convs if c["w"].shape[2] == 3]
    c_in1 = [c["w"].shape[1] for c in convs if c["w"].shape[2] == 1]
    W3 = 3 * max(c_in3) + 1 if c_in3 else 2
    W1 = max(c_in1) + 1 if c_in1 else 2

    def flat_pack(c, ncols):
        w, b = c["w"], c["b"]
        co, ci, k = w.shape
        wf = jnp.transpose(w, (0, 2, 1)).reshape(co, k * ci)
        wf = jnp.concatenate([wf, b[:, None]], axis=1)      # bias column last
        return jnp.zeros((c_max, ncols), jnp.float32).at[:co, :k * ci + 1].set(wf)

    k3_idx, k1_idx, w3_list, w1_list = {}, {}, [], []
    for i, c in enumerate(convs):
        if c["w"].shape[2] == 3:
            k3_idx[i] = len(w3_list)
            w3_list.append(flat_pack(c, W3))
        else:
            k1_idx[i] = len(w1_list)
            w1_list.append(flat_pack(c, W1))
    if not w1_list:
        w1_list.append(jnp.zeros((c_max, W1), jnp.float32))
    w3_pack = jnp.stack(w3_list).astype(mxu_dtype)
    w1_pack = jnp.stack(w1_list).astype(mxu_dtype)

    # Static per-layer plan + host-precomputed nearest-x2 interleave matrices
    # (block-diagonal over the nb batch segments; 0/1 values, exact in bf16).
    plan, u_mats = [], []
    L, ci = T, 0
    for op in program:
        if op[0] == "conv":
            _, K, dil, pad, relu_in, relu_out = op
            cin = convs[ci]["w"].shape[1]
            idx = k3_idx[ci] if K == 3 else k1_idx[ci]
            plan.append(("conv", K, idx, dil, pad, relu_in, relu_out, cin))
            ci += 1
        elif op[0] == "res":
            dil = op[1]
            cin = convs[ci]["w"].shape[1]
            plan.append(("res", k3_idx[ci], k1_idx[ci + 1], dil, cin))
            ci += 2
        else:
            n_lane = nb * L
            rows = jnp.arange(n_lane)[:, None]
            cols = jnp.arange(2 * n_lane)[None, :]
            u_mats.append(((cols // 2) == rows).astype(mxu_dtype))
            plan.append(("up",))
            L *= 2

    # Advisory cost estimate (weights / upsample matrices fetched once).
    flops, L, ci = 0, T, 0
    for op in program:
        if op[0] in ("conv", "res"):
            for _ in range(1 if op[0] == "conv" else 2):
                w = convs[ci]["w"]
                ci += 1
                flops += 2 * c_max * (w.shape[1] * w.shape[2] + 1) * L * N
        else:
            flops += 2 * c_max * L * (2 * L) * N
            L *= 2
    bytes_accessed = (xin.size * xin.dtype.itemsize
                      + n_pad * c_last * T_out * xin.dtype.itemsize
                      + w3_pack.size * w3_pack.dtype.itemsize
                      + w1_pack.size * w1_pack.dtype.itemsize
                      + sum(u.size * u.dtype.itemsize for u in u_mats))

    in_specs = [pl.BlockSpec((nb, c_in0, T), lambda i: (i, 0, 0)),
                pl.BlockSpec(w3_pack.shape, lambda i: (0, 0, 0)),
                pl.BlockSpec(w1_pack.shape, lambda i: (0, 0, 0))]
    in_specs += [pl.BlockSpec(u.shape, lambda i: (0, 0)) for u in u_mats]
    out_specs = pl.BlockSpec((c_last, nb * T_out), lambda i: (0, i))

    kernel = functools.partial(_decoder_kernel, plan=tuple(plan), nb=nb,
                               t_in=T, c_last=c_last, mxu_dtype=mxu_dtype)

    y_lanes = pl.pallas_call(
        kernel,
        out_shape=jax.ShapeDtypeStruct((c_last, n_pad * T_out), x.dtype),
        grid=grid,
        in_specs=in_specs,
        out_specs=out_specs,
        compiler_params=pltpu.CompilerParams(dimension_semantics=("parallel",)),
        cost_estimate=pl.CostEstimate(flops=int(flops), transcendentals=0,
                                      bytes_accessed=int(bytes_accessed)),
    )(xin, w3_pack, w1_pack, *u_mats)

    # Undo the lane layout: lane = batch*T_out + t  ->  (N, c_last, T_out).
    y = y_lanes.reshape(c_last, n_pad, T_out).transpose(1, 0, 2)
    return y[:N]


# --------------------------- parameters / program ----------------------------

def _init_conv(key, c_out, c_in, k):
    # torch.nn.Conv1d default init: U(-1/sqrt(fan_in), 1/sqrt(fan_in))
    kw, kb = jax.random.split(key)
    bound = 1.0 / math.sqrt(c_in * k)
    w = jax.random.uniform(kw, (c_out, c_in, k), jnp.float32, -bound, bound)
    b = jax.random.uniform(kb, (c_out,), jnp.float32, -bound, bound)
    return dict(w=w, b=b)


def build_decoder(key, input_emb_width=3, output_emb_width=32, down_t=2,
                  stride_t=2, width=32, depth=2, dilation_growth_rate=3):
    convs, program = [], []
    keys = iter(jax.random.split(key, 256))

    # Conv1d(output_emb_width, width, 3, 1, 1) + ReLU
    convs.append(_init_conv(next(keys), width, output_emb_width, 3))
    program.append(("conv", 3, 1, 1, False, True))

    for _ in range(down_t):
        # Resnet1D(width, depth, dilation_growth_rate, reverse_dilation=True)
        dilations = [dilation_growth_rate ** d for d in range(depth)][::-1]
        for dil in dilations:
            convs.append(_init_conv(next(keys), width, width, 3))  # conv1 (3, dilated)
            convs.append(_init_conv(next(keys), width, width, 1))  # conv2 (1x1)
            program.append(("res", dil))
        # nn.Upsample(scale_factor=2, mode='nearest')
        program.append(("up",))
        # Conv1d(width, width, 3, 1, 1)
        convs.append(_init_conv(next(keys), width, width, 3))
        program.append(("conv", 3, 1, 1, False, False))

    # Conv1d(width, width, 3, 1, 1) + ReLU
    convs.append(_init_conv(next(keys), width, width, 3))
    program.append(("conv", 3, 1, 1, False, True))
    # Conv1d(width, input_emb_width, 3, 1, 1)
    convs.append(_init_conv(next(keys), input_emb_width, width, 3))
    program.append(("conv", 3, 1, 1, False, False))

    return dict(convs=convs, program=program)


# ------------------------- pure-JAX reference check --------------------------

def _conv1d_ref(x, w, b, padding, dilation):
    y = lax.conv_general_dilated(
        x, w, window_strides=(1,), padding=[(padding, padding)],
        rhs_dilation=(dilation,), dimension_numbers=("NCH", "OIH", "NCH"),
        precision=lax.Precision.HIGHEST)
    return y + b[None, :, None]


def decoder_forward_ref(params, x):
    convs = params["convs"]
    ci = 0
    for op in params["program"]:
        if op[0] == "conv":
            _, K, dil, pad, relu_in, relu_out = op
            h = jnp.maximum(x, 0.0) if relu_in else x
            x = _conv1d_ref(h, convs[ci]["w"], convs[ci]["b"], pad, dil)
            ci += 1
            if relu_out:
                x = jnp.maximum(x, 0.0)
        elif op[0] == "res":
            dil = op[1]
            h = _conv1d_ref(jnp.maximum(x, 0.0), convs[ci]["w"], convs[ci]["b"],
                            dil, dil)
            ci += 1
            x = _conv1d_ref(jnp.maximum(h, 0.0), convs[ci]["w"], convs[ci]["b"],
                            0, 1) + x
            ci += 1
        else:
            x = jnp.repeat(x, 2, axis=-1)     # nearest x2
    return x


# ----------------------------------- main ------------------------------------

if __name__ == "__main__":
    key = jax.random.PRNGKey(0)
    k_param, k_x = jax.random.split(key)

    # Small config consistent with Spatial_transformer_Decoder: maps
    # (N, output_emb_width, T) latents -> (N, input_emb_width, T * 2**down_t).
    # N=4 so nb=2 gives lane-dense 128-wide output blocks AND 2 grid steps.
    N, T = 4, 16
    INPUT_EMB_W, OUTPUT_EMB_W, WIDTH, DOWN_T, DEPTH, GROWTH = 3, 32, 32, 2, 2, 3

    params = build_decoder(k_param, input_emb_width=INPUT_EMB_W,
                           output_emb_width=OUTPUT_EMB_W, down_t=DOWN_T,
                           stride_t=2, width=WIDTH, depth=DEPTH,
                           dilation_growth_rate=GROWTH)
    x = jax.random.normal(k_x, (N, OUTPUT_EMB_W, T), jnp.float32)

    y = decoder_forward(params, x)            # bf16 MXU operands, f32 accum
    y = jax.block_until_ready(y)

    assert y.shape == (N, INPUT_EMB_W, T * 2 ** DOWN_T), y.shape

    y_ref = decoder_forward_ref(params, x)
    max_err = float(jnp.max(jnp.abs(y - y_ref)))
    # bf16 MXU operands (per perf review for v6e/v7x) vs HIGHEST-precision f32
    # XLA conv: loosened tolerance.  The f32 path (mxu_dtype=jnp.float32)
    # passes at 2e-3.
    if not (max_err < 3e-2):
        raise AssertionError(f"mismatch vs reference, max abs err = {max_err}")

    print("KERNEL_OK")
</pallas_src>

<mosaic_0001>
module attributes {stable_mosaic.version = 11 : i64} {
  func.func @_decoder_kernel(%arg0: i32, %arg1: memref<2x32x16xf32, #tpu.memory_space<vmem>>, %arg2: memref<9x32x97xbf16, #tpu.memory_space<vmem>>, %arg3: memref<4x32x33xbf16, #tpu.memory_space<vmem>>, %arg4: memref<32x64xbf16, #tpu.memory_space<vmem>>, %arg5: memref<64x128xbf16, #tpu.memory_space<vmem>>, %arg6: memref<3x128xf32, #tpu.memory_space<vmem>>) attributes {dimension_semantics = [#tpu.dimension_semantics<parallel>], iteration_bounds = array<i64: 2>, scalar_prefetch = 0 : i64, scratch_operands = 0 : i64, tpu.core_type = #tpu.core_type<tc>, window_params = [{transform_indices = @transform_0, window_bounds = array<i64: 2, 32, 16>}, {pipeline_mode = #tpu.pipeline_mode<synchronous>, transform_indices = @transform_1, window_bounds = array<i64: 9, 32, 97>}, {pipeline_mode = #tpu.pipeline_mode<synchronous>, transform_indices = @transform_2, window_bounds = array<i64: 4, 32, 33>}, {pipeline_mode = #tpu.pipeline_mode<synchronous>, transform_indices = @transform_3, window_bounds = array<i64: 32, 64>}, {pipeline_mode = #tpu.pipeline_mode<synchronous>, transform_indices = @transform_4, window_bounds = array<i64: 64, 128>}, {transform_indices = @transform_5, window_bounds = array<i64: 3, 128>}]} {
    %c0 = arith.constant 0 : index
    %c0_0 = arith.constant 0 : index
    %c0_1 = arith.constant 0 : index
    %0 = vector.load %arg1[%c0, %c0_0, %c0_1] : memref<2x32x16xf32, #tpu.memory_space<vmem>>, vector<1x32x16xf32>
    %1 = vector.shape_cast %0 : vector<1x32x16xf32> to vector<32x16xf32>
    %c1 = arith.constant 1 : index
    %c0_2 = arith.constant 0 : index
    %c0_3 = arith.constant 0 : index
    %2 = vector.load %arg1[%c1, %c0_2, %c0_3] : memref<2x32x16xf32, #tpu.memory_space<vmem>>, vector<1x32x16xf32>
    %3 = vector.shape_cast %2 : vector<1x32x16xf32> to vector<32x16xf32>
    %4 = tpu.concatenate %1, %3 in 1 : vector<32x16xf32>, vector<32x16xf32> -> vector<32x32xf32>
    %c1_i32 = arith.constant 1 : i32
    %5 = tpu.dynamic_rotate %4 by %c1_i32 dim 1 : vector<32x32xf32>, i32 -> vector<32x32xf32>
    %6 = tpu.iota {dimensions = array<i32: 1>} : vector<32x32xi32>
    %c16_i32 = arith.constant 16 : i32
    %c0_i32 = arith.constant 0 : i32
    %7 = arith.cmpi eq, %c16_i32, %c0_i32 : i32
    %c1_i32_4 = arith.constant 1 : i32
    %8 = arith.select %7, %c1_i32_4, %c16_i32 : i32
    %9 = vector.broadcast %8 : i32 to vector<32x32xi32>
    %10 = arith.remsi %6, %9 : vector<32x32xi32>
    %c0_i32_5 = arith.constant 0 : i32
    %11 = vector.broadcast %c0_i32_5 : i32 to vector<32x32xi32>
    %12 = arith.cmpi ne, %10, %11 : vector<32x32xi32>
    %c0_i32_6 = arith.constant 0 : i32
    %13 = vector.broadcast %c0_i32_6 : i32 to vector<32x32xi32>
    %14 = arith.cmpi slt, %10, %13 : vector<32x32xi32>
    %c0_i32_7 = arith.constant 0 : i32
    %15 = arith.cmpi slt, %8, %c0_i32_7 : i32
    %16 = vector.broadcast %15 : i1 to vector<32x32xi1>
    %17 = vector.broadcast %16 : vector<32x32xi1> to vector<32x32xi1>
    %18 = arith.xori %14, %17 : vector<32x32xi1>
    %19 = arith.andi %18, %12 : vector<32x32xi1>
    %20 = vector.broadcast %8 : i32 to vector<32x32xi32>
    %21 = arith.addi %10, %20 : vector<32x32xi32>
    %22 = arith.select %19, %21, %10 : vector<32x32xi1>, vector<32x32xi32>
    %c-1_i32 = arith.constant -1 : i32
    %23 = vector.broadcast %c-1_i32 : i32 to vector<32x32xi32>
    %24 = arith.addi %22, %23 : vector<32x32xi32>
    %c0_i32_8 = arith.constant 0 : i32
    %25 = vector.broadcast %c0_i32_8 : i32 to vector<32x32xi32>
    %26 = arith.cmpi sge, %24, %25 : vector<32x32xi32>
    %c-1_i32_9 = arith.constant -1 : i32
    %27 = vector.broadcast %c-1_i32_9 : i32 to vector<32x32xi32>
    %28 = arith.addi %22, %27 : vector<32x32xi32>
    %c16_i32_10 = arith.constant 16 : i32
    %29 = vector.broadcast %c16_i32_10 : i32 to vector<32x32xi32>
    %30 = arith.cmpi slt, %28, %29 : vector<32x32xi32>
    %31 = arith.andi %26, %30 : vector<32x32xi1>
    %cst = arith.constant 0.000000e+00 : f32
    %32 = vector.broadcast %cst : f32 to vector<32x32xf32>
    %33 = arith.select %31, %5, %32 : vector<32x32xi1>, vector<32x32xf32>
    %c31_i32 = arith.constant 31 : i32
    %34 = tpu.dynamic_rotate %4 by %c31_i32 dim 1 : vector<32x32xf32>, i32 -> vector<32x32xf32>
    %35 = tpu.iota {dimensions = array<i32: 1>} : vector<32x32xi32>
    %c16_i32_11 = arith.constant 16 : i32
    %c0_i32_12 = arith.constant 0 : i32
    %36 = arith.cmpi eq, %c16_i32_11, %c0_i32_12 : i32
    %c1_i32_13 = arith.constant 1 : i32
    %37 = arith.select %36, %c1_i32_13, %c16_i32_11 : i32
    %38 = vector.broadcast %37 : i32 to vector<32x32xi32>
    %39 = arith.remsi %35, %38 : vector<32x32xi32>
    %c0_i32_14 = arith.constant 0 : i32
    %40 = vector.broadcast %c0_i32_14 : i32 to vector<32x32xi32>
    %41 = arith.cmpi ne, %39, %40 : vector<32x32xi32>
    %c0_i32_15 = arith.constant 0 : i32
    %42 = vector.broadcast %c0_i32_15 : i32 to vector<32x32xi32>
    %43 = arith.cmpi slt, %39, %42 : vector<32x32xi32>
    %c0_i32_16 = arith.constant 0 : i32
    %44 = arith.cmpi slt, %37, %c0_i32_16 : i32
    %45 = vector.broadcast %44 : i1 to vector<32x32xi1>
    %46 = vector.broadcast %45 : vector<32x32xi1> to vector<32x32xi1>
    %47 = arith.xori %43, %46 : vector<32x32xi1>
    %48 = arith.andi %47, %41 : vector<32x32xi1>
    %49 = vector.broadcast %37 : i32 to vector<32x32xi32>
    %50 = arith.addi %39, %49 : vector<32x32xi32>
    %51 = arith.select %48, %50, %39 : vector<32x32xi1>, vector<32x32xi32>
    %c1_i32_17 = arith.constant 1 : i32
    %52 = vector.broadcast %c1_i32_17 : i32 to vector<32x32xi32>
    %53 = arith.addi %51, %52 : vector<32x32xi32>
    %c0_i32_18 = arith.constant 0 : i32
    %54 = vector.broadcast %c0_i32_18 : i32 to vector<32x32xi32>
    %55 = arith.cmpi sge, %53, %54 : vector<32x32xi32>
    %c1_i32_19 = arith.constant 1 : i32
    %56 = vector.broadcast %c1_i32_19 : i32 to vector<32x32xi32>
    %57 = arith.addi %51, %56 : vector<32x32xi32>
    %c16_i32_20 = arith.constant 16 : i32
    %58 = vector.broadcast %c16_i32_20 : i32 to vector<32x32xi32>
    %59 = arith.cmpi slt, %57, %58 : vector<32x32xi32>
    %60 = arith.andi %55, %59 : vector<32x32xi1>
    %cst_21 = arith.constant 0.000000e+00 : f32
    %61 = vector.broadcast %cst_21 : f32 to vector<32x32xf32>
    %62 = arith.select %60, %34, %61 : vector<32x32xi1>, vector<32x32xf32>
    %cst_22 = arith.constant 1.000000e+00 : f32
    %63 = vector.broadcast %cst_22 : f32 to vector<1x32xf32>
    %64 = tpu.concatenate %33, %4, %62, %63 in 0 : vector<32x32xf32>, vector<32x32xf32>, vector<32x32xf32>, vector<1x32xf32> -> vector<97x32xf32>
    %c0_23 = arith.constant 0 : index
    %c0_24 = arith.constant 0 : index
    %c0_25 = arith.constant 0 : index
    %65 = vector.load %arg2[%c0_23, %c0_24, %c0_25] : memref<9x32x97xbf16, #tpu.memory_space<vmem>>, vector<1x32x97xbf16>
    %66 = vector.shape_cast %65 : vector<1x32x97xbf16> to vector<32x97xbf16>
    %67 = arith.truncf %64 : vector<97x32xf32> to vector<97x32xbf16>
    %cst_26 = arith.constant dense<0.000000e+00> : vector<32x32xf32>
    %68 = tpu.matmul %66, %67, %cst_26 {dimension_numbers = #tpu.dot_dimension_numbers<[1], [0], [0], [1], [0, 0, 1, 1], [], []>} : vector<32x97xbf16>, vector<97x32xbf16>, vector<32x32xf32> -> vector<32x32xf32>
    %cst_27 = arith.constant 0.000000e+00 : f32
    %69 = vector.broadcast %cst_27 : f32 to vector<32x32xf32>
    %70 = arith.maximumf %68, %69 : vector<32x32xf32>
    %cst_28 = arith.constant 0.000000e+00 : f32
    %71 = vector.broadcast %cst_28 : f32 to vector<32x32xf32>
    %72 = arith.maximumf %70, %71 : vector<32x32xf32>
    %c3_i32 = arith.constant 3 : i32
    %73 = tpu.dynamic_rotate %72 by %c3_i32 dim 1 : vector<32x32xf32>, i32 -> vector<32x32xf32>
    %74 = tpu.iota {dimensions = array<i32: 1>} : vector<32x32xi32>
    %c16_i32_29 = arith.constant 16 : i32
    %c0_i32_30 = arith.constant 0 : i32
    %75 = arith.cmpi eq, %c16_i32_29, %c0_i32_30 : i32
    %c1_i32_31 = arith.constant 1 : i32
    %76 = arith.select %75, %c1_i32_31, %c16_i32_29 : i32
    %77 = vector.broadcast %76 : i32 to vector<32x32xi32>
    %78 = arith.remsi %74, %77 : vector<32x32xi32>
    %c0_i32_32 = arith.constant 0 : i32
    %79 = vector.broadcast %c0_i32_32 : i32 to vector<32x32xi32>
    %80 = arith.cmpi ne, %78, %79 : vector<32x32xi32>
    %c0_i32_33 = arith.constant 0 : i32
    %81 = vector.broadcast %c0_i32_33 : i32 to vector<32x32xi32>
    %82 = arith.cmpi slt, %78, %81 : vector<32x32xi32>
    %c0_i32_34 = arith.constant 0 : i32
    %83 = arith.cmpi slt, %76, %c0_i32_34 : i32
    %84 = vector.broadcast %83 : i1 to vector<32x32xi1>
    %85 = vector.broadcast %84 : vector<32x32xi1> to vector<32x32xi1>
    %86 = arith.xori %82, %85 : vector<32x32xi1>
    %87 = arith.andi %86, %80 : vector<32x32xi1>
    %88 = vector.broadcast %76 : i32 to vector<32x32xi32>
    %89 = arith.addi %78, %88 : vector<32x32xi32>
    %90 = arith.select %87, %89, %78 : vector<32x32xi1>, vector<32x32xi32>
    %c-3_i32 = arith.constant -3 : i32
    %91 = vector.broadcast %c-3_i32 : i32 to vector<32x32xi32>
    %92 = arith.addi %90, %91 : vector<32x32xi32>
    %c0_i32_35 = arith.constant 0 : i32
    %93 = vector.broadcast %c0_i32_35 : i32 to vector<32x32xi32>
    %94 = arith.cmpi sge, %92, %93 : vector<32x32xi32>
    %c-3_i32_36 = arith.constant -3 : i32
    %95 = vector.broadcast %c-3_i32_36 : i32 to vector<32x32xi32>
    %96 = arith.addi %90, %95 : vector<32x32xi32>
    %c16_i32_37 = arith.constant 16 : i32
    %97 = vector.broadcast %c16_i32_37 : i32 to vector<32x32xi32>
    %98 = arith.cmpi slt, %96, %97 : vector<32x32xi32>
    %99 = arith.andi %94, %98 : vector<32x32xi1>
    %cst_38 = arith.constant 0.000000e+00 : f32
    %100 = vector.broadcast %cst_38 : f32 to vector<32x32xf32>
    %101 = arith.select %99, %73, %100 : vector<32x32xi1>, vector<32x32xf32>
    %c29_i32 = arith.constant 29 : i32
    %102 = tpu.dynamic_rotate %72 by %c29_i32 dim 1 : vector<32x32xf32>, i32 -> vector<32x32xf32>
    %103 = tpu.iota {dimensions = array<i32: 1>} : vector<32x32xi32>
    %c16_i32_39 = arith.constant 16 : i32
    %c0_i32_40 = arith.constant 0 : i32
    %104 = arith.cmpi eq, %c16_i32_39, %c0_i32_40 : i32
    %c1_i32_41 = arith.constant 1 : i32
    %105 = arith.select %104, %c1_i32_41, %c16_i32_39 : i32
    %106 = vector.broadcast %105 : i32 to vector<32x32xi32>
    %107 = arith.remsi %103, %106 : vector<32x32xi32>
    %c0_i32_42 = arith.constant 0 : i32
    %108 = vector.broadcast %c0_i32_42 : i32 to vector<32x32xi32>
    %109 = arith.cmpi ne, %107, %108 : vector<32x32xi32>
    %c0_i32_43 = arith.constant 0 : i32
    %110 = vector.broadcast %c0_i32_43 : i32 to vector<32x32xi32>
    %111 = arith.cmpi slt, %107, %110 : vector<32x32xi32>
    %c0_i32_44 = arith.constant 0 : i32
    %112 = arith.cmpi slt, %105, %c0_i32_44 : i32
    %113 = vector.broadcast %112 : i1 to vector<32x32xi1>
    %114 = vector.broadcast %113 : vector<32x32xi1> to vector<32x32xi1>
    %115 = arith.xori %111, %114 : vector<32x32xi1>
    %116 = arith.andi %115, %109 : vector<32x32xi1>
    %117 = vector.broadcast %105 : i32 to vector<32x32xi32>
    %118 = arith.addi %107, %117 : vector<32x32xi32>
    %119 = arith.select %116, %118, %107 : vector<32x32xi1>, vector<32x32xi32>
    %c3_i32_45 = arith.constant 3 : i32
    %120 = vector.broadcast %c3_i32_45 : i32 to vector<32x32xi32>
    %121 = arith.addi %119, %120 : vector<32x32xi32>
    %c0_i32_46 = arith.constant 0 : i32
    %122 = vector.broadcast %c0_i32_46 : i32 to vector<32x32xi32>
    %123 = arith.cmpi sge, %121, %122 : vector<32x32xi32>
    %c3_i32_47 = arith.constant 3 : i32
    %124 = vector.broadcast %c3_i32_47 : i32 to vector<32x32xi32>
    %125 = arith.addi %119, %124 : vector<32x32xi32>
    %c16_i32_48 = arith.constant 16 : i32
    %126 = vector.broadcast %c16_i32_48 : i32 to vector<32x32xi32>
    %127 = arith.cmpi slt, %125, %126 : vector<32x32xi32>
    %128 = arith.andi %123, %127 : vector<32x32xi1>
    %cst_49 = arith.constant 0.000000e+00 : f32
    %129 = vector.broadcast %cst_49 : f32 to vector<32x32xf32>
    %130 = arith.select %128, %102, %129 : vector<32x32xi1>, vector<32x32xf32>
    %131 = tpu.concatenate %101, %72, %130, %63 in 0 : vector<32x32xf32>, vector<32x32xf32>, vector<32x32xf32>, vector<1x32xf32> -> vector<97x32xf32>
    %c1_50 = arith.constant 1 : index
    %c0_51 = arith.constant 0 : index
    %c0_52 = arith.constant 0 : index
    %132 = vector.load %arg2[%c1_50, %c0_51, %c0_52] : memref<9x32x97xbf16, #tpu.memory_space<vmem>>, vector<1x32x97xbf16>
    %133 = vector.shape_cast %132 : vector<1x32x97xbf16> to vector<32x97xbf16>
    %134 = arith.truncf %131 : vector<97x32xf32> to vector<97x32xbf16>
    %cst_53 = arith.constant dense<0.000000e+00> : vector<32x32xf32>
    %135 = tpu.matmul %133, %134, %cst_53 {dimension_numbers = #tpu.dot_dimension_numbers<[1], [0], [0], [1], [0, 0, 1, 1], [], []>} : vector<32x97xbf16>, vector<97x32xbf16>, vector<32x32xf32> -> vector<32x32xf32>
    %cst_54 = arith.constant 0.000000e+00 : f32
    %136 = vector.broadcast %cst_54 : f32 to vector<32x32xf32>
    %137 = arith.maximumf %135, %136 : vector<32x32xf32>
    %138 = tpu.concatenate %137, %63 in 0 : vector<32x32xf32>, vector<1x32xf32> -> vector<33x32xf32>
    %c0_55 = arith.constant 0 : index
    %c0_56 = arith.constant 0 : index
    %c0_57 = arith.constant 0 : index
    %139 = vector.load %arg3[%c0_55, %c0_56, %c0_57] : memref<4x32x33xbf16, #tpu.memory_space<vmem>>, vector<1x32x33xbf16>
    %140 = vector.shape_cast %139 : vector<1x32x33xbf16> to vector<32x33xbf16>
    %141 = arith.truncf %138 : vector<33x32xf32> to vector<33x32xbf16>
    %cst_58 = arith.constant dense<0.000000e+00> : vector<32x32xf32>
    %142 = tpu.matmul %140, %141, %cst_58 {dimension_numbers = #tpu.dot_dimension_numbers<[1], [0], [0], [1], [0, 0, 1, 1], [], []>} : vector<32x33xbf16>, vector<33x32xbf16>, vector<32x32xf32> -> vector<32x32xf32>
    %143 = arith.addf %142, %70 : vector<32x32xf32>
    %cst_59 = arith.constant 0.000000e+00 : f32
    %144 = vector.broadcast %cst_59 : f32 to vector<32x32xf32>
    %145 = arith.maximumf %143, %144 : vector<32x32xf32>
    %c1_i32_60 = arith.constant 1 : i32
    %146 = tpu.dynamic_rotate %145 by %c1_i32_60 dim 1 : vector<32x32xf32>, i32 -> vector<32x32xf32>
    %cst_61 = arith.constant 0.000000e+00 : f32
    %147 = vector.broadcast %cst_61 : f32 to vector<32x32xf32>
    %148 = arith.select %31, %146, %147 : vector<32x32xi1>, vector<32x32xf32>
    %c31_i32_62 = arith.constant 31 : i32
    %149 = tpu.dynamic_rotate %145 by %c31_i32_62 dim 1 : vector<32x32xf32>, i32 -> vector<32x32xf32>
    %cst_63 = arith.constant 0.000000e+00 : f32
    %150 = vector.broadcast %cst_63 : f32 to vector<32x32xf32>
    %151 = arith.select %60, %149, %150 : vector<32x32xi1>, vector<32x32xf32>
    %152 = tpu.concatenate %148, %145, %151, %63 in 0 : vector<32x32xf32>, vector<32x32xf32>, vector<32x32xf32>, vector<1x32xf32> -> vector<97x32xf32>
    %c2 = arith.constant 2 : index
    %c0_64 = arith.constant 0 : index
    %c0_65 = arith.constant 0 : index
    %153 = vector.load %arg2[%c2, %c0_64, %c0_65] : memref<9x32x97xbf16, #tpu.memory_space<vmem>>, vector<1x32x97xbf16>
    %154 = vector.shape_cast %153 : vector<1x32x97xbf16> to vector<32x97xbf16>
    %155 = arith.truncf %152 : vector<97x32xf32> to vector<97x32xbf16>
    %cst_66 = arith.constant dense<0.000000e+00> : vector<32x32xf32>
    %156 = tpu.matmul %154, %155, %cst_66 {dimension_numbers = #tpu.dot_dimension_numbers<[1], [0], [0], [1], [0, 0, 1, 1], [], []>} : vector<32x97xbf16>, vector<97x32xbf16>, vector<32x32xf32> -> vector<32x32xf32>
    %cst_67 = arith.constant 0.000000e+00 : f32
    %157 = vector.broadcast %cst_67 : f32 to vector<32x32xf32>
    %158 = arith.maximumf %156, %157 : vector<32x32xf32>
    %159 = tpu.concatenate %158, %63 in 0 : vector<32x32xf32>, vector<1x32xf32> -> vector<33x32xf32>
    %c1_68 = arith.constant 1 : index
    %c0_69 = arith.constant 0 : index
    %c0_70 = arith.constant 0 : index
    %160 = vector.load %arg3[%c1_68, %c0_69, %c0_70] : memref<4x32x33xbf16, #tpu.memory_space<vmem>>, vector<1x32x33xbf16>
    %161 = vector.shape_cast %160 : vector<1x32x33xbf16> to vector<32x33xbf16>
    %162 = arith.truncf %159 : vector<33x32xf32> to vector<33x32xbf16>
    %cst_71 = arith.constant dense<0.000000e+00> : vector<32x32xf32>
    %163 = tpu.matmul %161, %162, %cst_71 {dimension_numbers = #tpu.dot_dimension_numbers<[1], [0], [0], [1], [0, 0, 1, 1], [], []>} : vector<32x33xbf16>, vector<33x32xbf16>, vector<32x32xf32> -> vector<32x32xf32>
    %164 = arith.addf %163, %143 : vector<32x32xf32>
    %165 = arith.truncf %164 : vector<32x32xf32> to vector<32x32xbf16>
    %c0_72 = arith.constant 0 : index
    %c0_73 = arith.constant 0 : index
    %166 = vector.load %arg4[%c0_72, %c0_73] : memref<32x64xbf16, #tpu.memory_space<vmem>>, vector<32x64xbf16>
    %cst_74 = arith.constant dense<0.000000e+00> : vector<32x64xf32>
    %167 = tpu.matmul %165, %166, %cst_74 {dimension_numbers = #tpu.dot_dimension_numbers<[1], [0], [0], [1], [0, 0, 1, 1], [], []>} : vector<32x32xbf16>, vector<32x64xbf16>, vector<32x64xf32> -> vector<32x64xf32>
    %c1_i32_75 = arith.constant 1 : i32
    %168 = tpu.dynamic_rotate %167 by %c1_i32_75 dim 1 : vector<32x64xf32>, i32 -> vector<32x64xf32>
    %169 = tpu.iota {dimensions = array<i32: 1>} : vector<32x64xi32>
    %c32_i32 = arith.constant 32 : i32
    %c0_i32_76 = arith.constant 0 : i32
    %170 = arith.cmpi eq, %c32_i32, %c0_i32_76 : i32
    %c1_i32_77 = arith.constant 1 : i32
    %171 = arith.select %170, %c1_i32_77, %c32_i32 : i32
    %172 = vector.broadcast %171 : i32 to vector<32x64xi32>
    %173 = arith.remsi %169, %172 : vector<32x64xi32>
    %c0_i32_78 = arith.constant 0 : i32
    %174 = vector.broadcast %c0_i32_78 : i32 to vector<32x64xi32>
    %175 = arith.cmpi ne, %173, %174 : vector<32x64xi32>
    %c0_i32_79 = arith.constant 0 : i32
    %176 = vector.broadcast %c0_i32_79 : i32 to vector<32x64xi32>
    %177 = arith.cmpi slt, %173, %176 : vector<32x64xi32>
    %c0_i32_80 = arith.constant 0 : i32
    %178 = arith.cmpi slt, %171, %c0_i32_80 : i32
    %179 = vector.broadcast %178 : i1 to vector<32x64xi1>
    %180 = vector.broadcast %179 : vector<32x64xi1> to vector<32x64xi1>
    %181 = arith.xori %177, %180 : vector<32x64xi1>
    %182 = arith.andi %181, %175 : vector<32x64xi1>
    %183 = vector.broadcast %171 : i32 to vector<32x64xi32>
    %184 = arith.addi %173, %183 : vector<32x64xi32>
    %185 = arith.select %182, %184, %173 : vector<32x64xi1>, vector<32x64xi32>
    %c-1_i32_81 = arith.constant -1 : i32
    %186 = vector.broadcast %c-1_i32_81 : i32 to vector<32x64xi32>
    %187 = arith.addi %185, %186 : vector<32x64xi32>
    %c0_i32_82 = arith.constant 0 : i32
    %188 = vector.broadcast %c0_i32_82 : i32 to vector<32x64xi32>
    %189 = arith.cmpi sge, %187, %188 : vector<32x64xi32>
    %c-1_i32_83 = arith.constant -1 : i32
    %190 = vector.broadcast %c-1_i32_83 : i32 to vector<32x64xi32>
    %191 = arith.addi %185, %190 : vector<32x64xi32>
    %c32_i32_84 = arith.constant 32 : i32
    %192 = vector.broadcast %c32_i32_84 : i32 to vector<32x64xi32>
    %193 = arith.cmpi slt, %191, %192 : vector<32x64xi32>
    %194 = arith.andi %189, %193 : vector<32x64xi1>
    %cst_85 = arith.constant 0.000000e+00 : f32
    %195 = vector.broadcast %cst_85 : f32 to vector<32x64xf32>
    %196 = arith.select %194, %168, %195 : vector<32x64xi1>, vector<32x64xf32>
    %c63_i32 = arith.constant 63 : i32
    %197 = tpu.dynamic_rotate %167 by %c63_i32 dim 1 : vector<32x64xf32>, i32 -> vector<32x64xf32>
    %198 = tpu.iota {dimensions = array<i32: 1>} : vector<32x64xi32>
    %c32_i32_86 = arith.constant 32 : i32
    %c0_i32_87 = arith.constant 0 : i32
    %199 = arith.cmpi eq, %c32_i32_86, %c0_i32_87 : i32
    %c1_i32_88 = arith.constant 1 : i32
    %200 = arith.select %199, %c1_i32_88, %c32_i32_86 : i32
    %201 = vector.broadcast %200 : i32 to vector<32x64xi32>
    %202 = arith.remsi %198, %201 : vector<32x64xi32>
    %c0_i32_89 = arith.constant 0 : i32
    %203 = vector.broadcast %c0_i32_89 : i32 to vector<32x64xi32>
    %204 = arith.cmpi ne, %202, %203 : vector<32x64xi32>
    %c0_i32_90 = arith.constant 0 : i32
    %205 = vector.broadcast %c0_i32_90 : i32 to vector<32x64xi32>
    %206 = arith.cmpi slt, %202, %205 : vector<32x64xi32>
    %c0_i32_91 = arith.constant 0 : i32
    %207 = arith.cmpi slt, %200, %c0_i32_91 : i32
    %208 = vector.broadcast %207 : i1 to vector<32x64xi1>
    %209 = vector.broadcast %208 : vector<32x64xi1> to vector<32x64xi1>
    %210 = arith.xori %206, %209 : vector<32x64xi1>
    %211 = arith.andi %210, %204 : vector<32x64xi1>
    %212 = vector.broadcast %200 : i32 to vector<32x64xi32>
    %213 = arith.addi %202, %212 : vector<32x64xi32>
    %214 = arith.select %211, %213, %202 : vector<32x64xi1>, vector<32x64xi32>
    %c1_i32_92 = arith.constant 1 : i32
    %215 = vector.broadcast %c1_i32_92 : i32 to vector<32x64xi32>
    %216 = arith.addi %214, %215 : vector<32x64xi32>
    %c0_i32_93 = arith.constant 0 : i32
    %217 = vector.broadcast %c0_i32_93 : i32 to vector<32x64xi32>
    %218 = arith.cmpi sge, %216, %217 : vector<32x64xi32>
    %c1_i32_94 = arith.constant 1 : i32
    %219 = vector.broadcast %c1_i32_94 : i32 to vector<32x64xi32>
    %220 = arith.addi %214, %219 : vector<32x64xi32>
    %c32_i32_95 = arith.constant 32 : i32
    %221 = vector.broadcast %c32_i32_95 : i32 to vector<32x64xi32>
    %222 = arith.cmpi slt, %220, %221 : vector<32x64xi32>
    %223 = arith.andi %218, %222 : vector<32x64xi1>
    %cst_96 = arith.constant 0.000000e+00 : f32
    %224 = vector.broadcast %cst_96 : f32 to vector<32x64xf32>
    %225 = arith.select %223, %197, %224 : vector<32x64xi1>, vector<32x64xf32>
    %cst_97 = arith.constant 1.000000e+00 : f32
    %226 = vector.broadcast %cst_97 : f32 to vector<1x64xf32>
    %227 = tpu.concatenate %196, %167, %225, %226 in 0 : vector<32x64xf32>, vector<32x64xf32>, vector<32x64xf32>, vector<1x64xf32> -> vector<97x64xf32>
    %c3 = arith.constant 3 : index
    %c0_98 = arith.constant 0 : index
    %c0_99 = arith.constant 0 : index
    %228 = vector.load %arg2[%c3, %c0_98, %c0_99] : memref<9x32x97xbf16, #tpu.memory_space<vmem>>, vector<1x32x97xbf16>
    %229 = vector.shape_cast %228 : vector<1x32x97xbf16> to vector<32x97xbf16>
    %230 = arith.truncf %227 : vector<97x64xf32> to vector<97x64xbf16>
    %cst_100 = arith.constant dense<0.000000e+00> : vector<32x64xf32>
    %231 = tpu.matmul %229, %230, %cst_100 {dimension_numbers = #tpu.dot_dimension_numbers<[1], [0], [0], [1], [0, 0, 1, 1], [], []>} : vector<32x97xbf16>, vector<97x64xbf16>, vector<32x64xf32> -> vector<32x64xf32>
    %cst_101 = arith.constant 0.000000e+00 : f32
    %232 = vector.broadcast %cst_101 : f32 to vector<32x64xf32>
    %233 = arith.maximumf %231, %232 : vector<32x64xf32>
    %c3_i32_102 = arith.constant 3 : i32
    %234 = tpu.dynamic_rotate %233 by %c3_i32_102 dim 1 : vector<32x64xf32>, i32 -> vector<32x64xf32>
    %235 = tpu.iota {dimensions = array<i32: 1>} : vector<32x64xi32>
    %c32_i32_103 = arith.constant 32 : i32
    %c0_i32_104 = arith.constant 0 : i32
    %236 = arith.cmpi eq, %c32_i32_103, %c0_i32_104 : i32
    %c1_i32_105 = arith.constant 1 : i32
    %237 = arith.select %236, %c1_i32_105, %c32_i32_103 : i32
    %238 = vector.broadcast %237 : i32 to vector<32x64xi32>
    %239 = arith.remsi %235, %238 : vector<32x64xi32>
    %c0_i32_106 = arith.constant 0 : i32
    %240 = vector.broadcast %c0_i32_106 : i32 to vector<32x64xi32>
    %241 = arith.cmpi ne, %239, %240 : vector<32x64xi32>
    %c0_i32_107 = arith.constant 0 : i32
    %242 = vector.broadcast %c0_i32_107 : i32 to vector<32x64xi32>
    %243 = arith.cmpi slt, %239, %242 : vector<32x64xi32>
    %c0_i32_108 = arith.constant 0 : i32
    %244 = arith.cmpi slt, %237, %c0_i32_108 : i32
    %245 = vector.broadcast %244 : i1 to vector<32x64xi1>
    %246 = vector.broadcast %245 : vector<32x64xi1> to vector<32x64xi1>
    %247 = arith.xori %243, %246 : vector<32x64xi1>
    %248 = arith.andi %247, %241 : vector<32x64xi1>
    %249 = vector.broadcast %237 : i32 to vector<32x64xi32>
    %250 = arith.addi %239, %249 : vector<32x64xi32>
    %251 = arith.select %248, %250, %239 : vector<32x64xi1>, vector<32x64xi32>
    %c-3_i32_109 = arith.constant -3 : i32
    %252 = vector.broadcast %c-3_i32_109 : i32 to vector<32x64xi32>
    %253 = arith.addi %251, %252 : vector<32x64xi32>
    %c0_i32_110 = arith.constant 0 : i32
    %254 = vector.broadcast %c0_i32_110 : i32 to vector<32x64xi32>
    %255 = arith.cmpi sge, %253, %254 : vector<32x64xi32>
    %c-3_i32_111 = arith.constant -3 : i32
    %256 = vector.broadcast %c-3_i32_111 : i32 to vector<32x64xi32>
    %257 = arith.addi %251, %256 : vector<32x64xi32>
    %c32_i32_112 = arith.constant 32 : i32
    %258 = vector.broadcast %c32_i32_112 : i32 to vector<32x64xi32>
    %259 = arith.cmpi slt, %257, %258 : vector<32x64xi32>
    %260 = arith.andi %255, %259 : vector<32x64xi1>
    %cst_113 = arith.constant 0.000000e+00 : f32
    %261 = vector.broadcast %cst_113 : f32 to vector<32x64xf32>
    %262 = arith.select %260, %234, %261 : vector<32x64xi1>, vector<32x64xf32>
    %c61_i32 = arith.constant 61 : i32
    %263 = tpu.dynamic_rotate %233 by %c61_i32 dim 1 : vector<32x64xf32>, i32 -> vector<32x64xf32>
    %264 = tpu.iota {dimensions = array<i32: 1>} : vector<32x64xi32>
    %c32_i32_114 = arith.constant 32 : i32
    %c0_i32_115 = arith.constant 0 : i32
    %265 = arith.cmpi eq, %c32_i32_114, %c0_i32_115 : i32
    %c1_i32_116 = arith.constant 1 : i32
    %266 = arith.select %265, %c1_i32_116, %c32_i32_114 : i32
    %267 = vector.broadcast %266 : i32 to vector<32x64xi32>
    %268 = arith.remsi %264, %267 : vector<32x64xi32>
    %c0_i32_117 = arith.constant 0 : i32
    %269 = vector.broadcast %c0_i32_117 : i32 to vector<32x64xi32>
    %270 = arith.cmpi ne, %268, %269 : vector<32x64xi32>
    %c0_i32_118 = arith.constant 0 : i32
    %271 = vector.broadcast %c0_i32_118 : i32 to vector<32x64xi32>
    %272 = arith.cmpi slt, %268, %271 : vector<32x64xi32>
    %c0_i32_119 = arith.constant 0 : i32
    %273 = arith.cmpi slt, %266, %c0_i32_119 : i32
    %274 = vector.broadcast %273 : i1 to vector<32x64xi1>
    %275 = vector.broadcast %274 : vector<32x64xi1> to vector<32x64xi1>
    %276 = arith.xori %272, %275 : vector<32x64xi1>
    %277 = arith.andi %276, %270 : vector<32x64xi1>
    %278 = vector.broadcast %266 : i32 to vector<32x64xi32>
    %279 = arith.addi %268, %278 : vector<32x64xi32>
    %280 = arith.select %277, %279, %268 : vector<32x64xi1>, vector<32x64xi32>
    %c3_i32_120 = arith.constant 3 : i32
    %281 = vector.broadcast %c3_i32_120 : i32 to vector<32x64xi32>
    %282 = arith.addi %280, %281 : vector<32x64xi32>
    %c0_i32_121 = arith.constant 0 : i32
    %283 = vector.broadcast %c0_i32_121 : i32 to vector<32x64xi32>
    %284 = arith.cmpi sge, %282, %283 : vector<32x64xi32>
    %c3_i32_122 = arith.constant 3 : i32
    %285 = vector.broadcast %c3_i32_122 : i32 to vector<32x64xi32>
    %286 = arith.addi %280, %285 : vector<32x64xi32>
    %c32_i32_123 = arith.constant 32 : i32
    %287 = vector.broadcast %c32_i32_123 : i32 to vector<32x64xi32>
    %288 = arith.cmpi slt, %286, %287 : vector<32x64xi32>
    %289 = arith.andi %284, %288 : vector<32x64xi1>
    %cst_124 = arith.constant 0.000000e+00 : f32
    %290 = vector.broadcast %cst_124 : f32 to vector<32x64xf32>
    %291 = arith.select %289, %263, %290 : vector<32x64xi1>, vector<32x64xf32>
    %292 = tpu.concatenate %262, %233, %291, %226 in 0 : vector<32x64xf32>, vector<32x64xf32>, vector<32x64xf32>, vector<1x64xf32> -> vector<97x64xf32>
    %c4 = arith.constant 4 : index
    %c0_125 = arith.constant 0 : index
    %c0_126 = arith.constant 0 : index
    %293 = vector.load %arg2[%c4, %c0_125, %c0_126] : memref<9x32x97xbf16, #tpu.memory_space<vmem>>, vector<1x32x97xbf16>
    %294 = vector.shape_cast %293 : vector<1x32x97xbf16> to vector<32x97xbf16>
    %295 = arith.truncf %292 : vector<97x64xf32> to vector<97x64xbf16>
    %cst_127 = arith.constant dense<0.000000e+00> : vector<32x64xf32>
    %296 = tpu.matmul %294, %295, %cst_127 {dimension_numbers = #tpu.dot_dimension_numbers<[1], [0], [0], [1], [0, 0, 1, 1], [], []>} : vector<32x97xbf16>, vector<97x64xbf16>, vector<32x64xf32> -> vector<32x64xf32>
    %cst_128 = arith.constant 0.000000e+00 : f32
    %297 = vector.broadcast %cst_128 : f32 to vector<32x64xf32>
    %298 = arith.maximumf %296, %297 : vector<32x64xf32>
    %299 = tpu.concatenate %298, %226 in 0 : vector<32x64xf32>, vector<1x64xf32> -> vector<33x64xf32>
    %c2_129 = arith.constant 2 : index
    %c0_130 = arith.constant 0 : index
    %c0_131 = arith.constant 0 : index
    %300 = vector.load %arg3[%c2_129, %c0_130, %c0_131] : memref<4x32x33xbf16, #tpu.memory_space<vmem>>, vector<1x32x33xbf16>
    %301 = vector.shape_cast %300 : vector<1x32x33xbf16> to vector<32x33xbf16>
    %302 = arith.truncf %299 : vector<33x64xf32> to vector<33x64xbf16>
    %cst_132 = arith.constant dense<0.000000e+00> : vector<32x64xf32>
    %303 = tpu.matmul %301, %302, %cst_132 {dimension_numbers = #tpu.dot_dimension_numbers<[1], [0], [0], [1], [0, 0, 1, 1], [], []>} : vector<32x33xbf16>, vector<33x64xbf16>, vector<32x64xf32> -> vector<32x64xf32>
    %304 = arith.addf %303, %231 : vector<32x64xf32>
    %cst_133 = arith.constant 0.000000e+00 : f32
    %305 = vector.broadcast %cst_133 : f32 to vector<32x64xf32>
    %306 = arith.maximumf %304, %305 : vector<32x64xf32>
    %c1_i32_134 = arith.constant 1 : i32
    %307 = tpu.dynamic_rotate %306 by %c1_i32_134 dim 1 : vector<32x64xf32>, i32 -> vector<32x64xf32>
    %cst_135 = arith.constant 0.000000e+00 : f32
    %308 = vector.broadcast %cst_135 : f32 to vector<32x64xf32>
    %309 = arith.select %194, %307, %308 : vector<32x64xi1>, vector<32x64xf32>
    %c63_i32_136 = arith.constant 63 : i32
    %310 = tpu.dynamic_rotate %306 by %c63_i32_136 dim 1 : vector<32x64xf32>, i32 -> vector<32x64xf32>
    %cst_137 = arith.constant 0.000000e+00 : f32
    %311 = vector.broadcast %cst_137 : f32 to vector<32x64xf32>
    %312 = arith.select %223, %310, %311 : vector<32x64xi1>, vector<32x64xf32>
    %313 = tpu.concatenate %309, %306, %312, %226 in 0 : vector<32x64xf32>, vector<32x64xf32>, vector<32x64xf32>, vector<1x64xf32> -> vector<97x64xf32>
    %c5 = arith.constant 5 : index
    %c0_138 = arith.constant 0 : index
    %c0_139 = arith.constant 0 : index
    %314 = vector.load %arg2[%c5, %c0_138, %c0_139] : memref<9x32x97xbf16, #tpu.memory_space<vmem>>, vector<1x32x97xbf16>
    %315 = vector.shape_cast %314 : vector<1x32x97xbf16> to vector<32x97xbf16>
    %316 = arith.truncf %313 : vector<97x64xf32> to vector<97x64xbf16>
    %cst_140 = arith.constant dense<0.000000e+00> : vector<32x64xf32>
    %317 = tpu.matmul %315, %316, %cst_140 {dimension_numbers = #tpu.dot_dimension_numbers<[1], [0], [0], [1], [0, 0, 1, 1], [], []>} : vector<32x97xbf16>, vector<97x64xbf16>, vector<32x64xf32> -> vector<32x64xf32>
    %cst_141 = arith.constant 0.000000e+00 : f32
    %318 = vector.broadcast %cst_141 : f32 to vector<32x64xf32>
    %319 = arith.maximumf %317, %318 : vector<32x64xf32>
    %320 = tpu.concatenate %319, %226 in 0 : vector<32x64xf32>, vector<1x64xf32> -> vector<33x64xf32>
    %c3_142 = arith.constant 3 : index
    %c0_143 = arith.constant 0 : index
    %c0_144 = arith.constant 0 : index
    %321 = vector.load %arg3[%c3_142, %c0_143, %c0_144] : memref<4x32x33xbf16, #tpu.memory_space<vmem>>, vector<1x32x33xbf16>
    %322 = vector.shape_cast %321 : vector<1x32x33xbf16> to vector<32x33xbf16>
    %323 = arith.truncf %320 : vector<33x64xf32> to vector<33x64xbf16>
    %cst_145 = arith.constant dense<0.000000e+00> : vector<32x64xf32>
    %324 = tpu.matmul %322, %323, %cst_145 {dimension_numbers = #tpu.dot_dimension_numbers<[1], [0], [0], [1], [0, 0, 1, 1], [], []>} : vector<32x33xbf16>, vector<33x64xbf16>, vector<32x64xf32> -> vector<32x64xf32>
    %325 = arith.addf %324, %304 : vector<32x64xf32>
    %326 = arith.truncf %325 : vector<32x64xf32> to vector<32x64xbf16>
    %c0_146 = arith.constant 0 : index
    %c0_147 = arith.constant 0 : index
    %327 = vector.load %arg5[%c0_146, %c0_147] : memref<64x128xbf16, #tpu.memory_space<vmem>>, vector<64x128xbf16>
    %cst_148 = arith.constant dense<0.000000e+00> : vector<32x128xf32>
    %328 = tpu.matmul %326, %327, %cst_148 {dimension_numbers = #tpu.dot_dimension_numbers<[1], [0], [0], [1], [0, 0, 1, 1], [], []>} : vector<32x64xbf16>, vector<64x128xbf16>, vector<32x128xf32> -> vector<32x128xf32>
    %c1_i32_149 = arith.constant 1 : i32
    %329 = tpu.dynamic_rotate %328 by %c1_i32_149 dim 1 : vector<32x128xf32>, i32 -> vector<32x128xf32>
    %330 = tpu.iota {dimensions = array<i32: 1>} : vector<32x128xi32>
    %c64_i32 = arith.constant 64 : i32
    %c0_i32_150 = arith.constant 0 : i32
    %331 = arith.cmpi eq, %c64_i32, %c0_i32_150 : i32
    %c1_i32_151 = arith.constant 1 : i32
    %332 = arith.select %331, %c1_i32_151, %c64_i32 : i32
    %333 = vector.broadcast %332 : i32 to vector<32x128xi32>
    %334 = arith.remsi %330, %333 : vector<32x128xi32>
    %c0_i32_152 = arith.constant 0 : i32
    %335 = vector.broadcast %c0_i32_152 : i32 to vector<32x128xi32>
    %336 = arith.cmpi ne, %334, %335 : vector<32x128xi32>
    %c0_i32_153 = arith.constant 0 : i32
    %337 = vector.broadcast %c0_i32_153 : i32 to vector<32x128xi32>
    %338 = arith.cmpi slt, %334, %337 : vector<32x128xi32>
    %c0_i32_154 = arith.constant 0 : i32
    %339 = arith.cmpi slt, %332, %c0_i32_154 : i32
    %340 = vector.broadcast %339 : i1 to vector<32x128xi1>
    %341 = vector.broadcast %340 : vector<32x128xi1> to vector<32x128xi1>
    %342 = arith.xori %338, %341 : vector<32x128xi1>
    %343 = arith.andi %342, %336 : vector<32x128xi1>
    %344 = vector.broadcast %332 : i32 to vector<32x128xi32>
    %345 = arith.addi %334, %344 : vector<32x128xi32>
    %346 = arith.select %343, %345, %334 : vector<32x128xi1>, vector<32x128xi32>
    %c-1_i32_155 = arith.constant -1 : i32
    %347 = vector.broadcast %c-1_i32_155 : i32 to vector<32x128xi32>
    %348 = arith.addi %346, %347 : vector<32x128xi32>
    %c0_i32_156 = arith.constant 0 : i32
    %349 = vector.broadcast %c0_i32_156 : i32 to vector<32x128xi32>
    %350 = arith.cmpi sge, %348, %349 : vector<32x128xi32>
    %c-1_i32_157 = arith.constant -1 : i32
    %351 = vector.broadcast %c-1_i32_157 : i32 to vector<32x128xi32>
    %352 = arith.addi %346, %351 : vector<32x128xi32>
    %c64_i32_158 = arith.constant 64 : i32
    %353 = vector.broadcast %c64_i32_158 : i32 to vector<32x128xi32>
    %354 = arith.cmpi slt, %352, %353 : vector<32x128xi32>
    %355 = arith.andi %350, %354 : vector<32x128xi1>
    %cst_159 = arith.constant 0.000000e+00 : f32
    %356 = vector.broadcast %cst_159 : f32 to vector<32x128xf32>
    %357 = arith.select %355, %329, %356 : vector<32x128xi1>, vector<32x128xf32>
    %c127_i32 = arith.constant 127 : i32
    %358 = tpu.dynamic_rotate %328 by %c127_i32 dim 1 : vector<32x128xf32>, i32 -> vector<32x128xf32>
    %359 = tpu.iota {dimensions = array<i32: 1>} : vector<32x128xi32>
    %c64_i32_160 = arith.constant 64 : i32
    %c0_i32_161 = arith.constant 0 : i32
    %360 = arith.cmpi eq, %c64_i32_160, %c0_i32_161 : i32
    %c1_i32_162 = arith.constant 1 : i32
    %361 = arith.select %360, %c1_i32_162, %c64_i32_160 : i32
    %362 = vector.broadcast %361 : i32 to vector<32x128xi32>
    %363 = arith.remsi %359, %362 : vector<32x128xi32>
    %c0_i32_163 = arith.constant 0 : i32
    %364 = vector.broadcast %c0_i32_163 : i32 to vector<32x128xi32>
    %365 = arith.cmpi ne, %363, %364 : vector<32x128xi32>
    %c0_i32_164 = arith.constant 0 : i32
    %366 = vector.broadcast %c0_i32_164 : i32 to vector<32x128xi32>
    %367 = arith.cmpi slt, %363, %366 : vector<32x128xi32>
    %c0_i32_165 = arith.constant 0 : i32
    %368 = arith.cmpi slt, %361, %c0_i32_165 : i32
    %369 = vector.broadcast %368 : i1 to vector<32x128xi1>
    %370 = vector.broadcast %369 : vector<32x128xi1> to vector<32x128xi1>
    %371 = arith.xori %367, %370 : vector<32x128xi1>
    %372 = arith.andi %371, %365 : vector<32x128xi1>
    %373 = vector.broadcast %361 : i32 to vector<32x128xi32>
    %374 = arith.addi %363, %373 : vector<32x128xi32>
    %375 = arith.select %372, %374, %363 : vector<32x128xi1>, vector<32x128xi32>
    %c1_i32_166 = arith.constant 1 : i32
    %376 = vector.broadcast %c1_i32_166 : i32 to vector<32x128xi32>
    %377 = arith.addi %375, %376 : vector<32x128xi32>
    %c0_i32_167 = arith.constant 0 : i32
    %378 = vector.broadcast %c0_i32_167 : i32 to vector<32x128xi32>
    %379 = arith.cmpi sge, %377, %378 : vector<32x128xi32>
    %c1_i32_168 = arith.constant 1 : i32
    %380 = vector.broadcast %c1_i32_168 : i32 to vector<32x128xi32>
    %381 = arith.addi %375, %380 : vector<32x128xi32>
    %c64_i32_169 = arith.constant 64 : i32
    %382 = vector.broadcast %c64_i32_169 : i32 to vector<32x128xi32>
    %383 = arith.cmpi slt, %381, %382 : vector<32x128xi32>
    %384 = arith.andi %379, %383 : vector<32x128xi1>
    %cst_170 = arith.constant 0.000000e+00 : f32
    %385 = vector.broadcast %cst_170 : f32 to vector<32x128xf32>
    %386 = arith.select %384, %358, %385 : vector<32x128xi1>, vector<32x128xf32>
    %cst_171 = arith.constant 1.000000e+00 : f32
    %387 = vector.broadcast %cst_171 : f32 to vector<1x128xf32>
    %388 = tpu.concatenate %357, %328, %386, %387 in 0 : vector<32x128xf32>, vector<32x128xf32>, vector<32x128xf32>, vector<1x128xf32> -> vector<97x128xf32>
    %c6 = arith.constant 6 : index
    %c0_172 = arith.constant 0 : index
    %c0_173 = arith.constant 0 : index
    %389 = vector.load %arg2[%c6, %c0_172, %c0_173] : memref<9x32x97xbf16, #tpu.memory_space<vmem>>, vector<1x32x97xbf16>
    %390 = vector.shape_cast %389 : vector<1x32x97xbf16> to vector<32x97xbf16>
    %391 = arith.truncf %388 : vector<97x128xf32> to vector<97x128xbf16>
    %cst_174 = arith.constant dense<0.000000e+00> : vector<32x128xf32>
    %392 = tpu.matmul %390, %391, %cst_174 {dimension_numbers = #tpu.dot_dimension_numbers<[1], [0], [0], [1], [0, 0, 1, 1], [], []>} : vector<32x97xbf16>, vector<97x128xbf16>, vector<32x128xf32> -> vector<32x128xf32>
    %c1_i32_175 = arith.constant 1 : i32
    %393 = tpu.dynamic_rotate %392 by %c1_i32_175 dim 1 : vector<32x128xf32>, i32 -> vector<32x128xf32>
    %cst_176 = arith.constant 0.000000e+00 : f32
    %394 = vector.broadcast %cst_176 : f32 to vector<32x128xf32>
    %395 = arith.select %355, %393, %394 : vector<32x128xi1>, vector<32x128xf32>
    %c127_i32_177 = arith.constant 127 : i32
    %396 = tpu.dynamic_rotate %392 by %c127_i32_177 dim 1 : vector<32x128xf32>, i32 -> vector<32x128xf32>
    %cst_178 = arith.constant 0.000000e+00 : f32
    %397 = vector.broadcast %cst_178 : f32 to vector<32x128xf32>
    %398 = arith.select %384, %396, %397 : vector<32x128xi1>, vector<32x128xf32>
    %399 = tpu.concatenate %395, %392, %398, %387 in 0 : vector<32x128xf32>, vector<32x128xf32>, vector<32x128xf32>, vector<1x128xf32> -> vector<97x128xf32>
    %c7 = arith.constant 7 : index
    %c0_179 = arith.constant 0 : index
    %c0_180 = arith.constant 0 : index
    %400 = vector.load %arg2[%c7, %c0_179, %c0_180] : memref<9x32x97xbf16, #tpu.memory_space<vmem>>, vector<1x32x97xbf16>
    %401 = vector.shape_cast %400 : vector<1x32x97xbf16> to vector<32x97xbf16>
    %402 = arith.truncf %399 : vector<97x128xf32> to vector<97x128xbf16>
    %cst_181 = arith.constant dense<0.000000e+00> : vector<32x128xf32>
    %403 = tpu.matmul %401, %402, %cst_181 {dimension_numbers = #tpu.dot_dimension_numbers<[1], [0], [0], [1], [0, 0, 1, 1], [], []>} : vector<32x97xbf16>, vector<97x128xbf16>, vector<32x128xf32> -> vector<32x128xf32>
    %cst_182 = arith.constant 0.000000e+00 : f32
    %404 = vector.broadcast %cst_182 : f32 to vector<32x128xf32>
    %405 = arith.maximumf %403, %404 : vector<32x128xf32>
    %c1_i32_183 = arith.constant 1 : i32
    %406 = tpu.dynamic_rotate %405 by %c1_i32_183 dim 1 : vector<32x128xf32>, i32 -> vector<32x128xf32>
    %cst_184 = arith.constant 0.000000e+00 : f32
    %407 = vector.broadcast %cst_184 : f32 to vector<32x128xf32>
    %408 = arith.select %355, %406, %407 : vector<32x128xi1>, vector<32x128xf32>
    %c127_i32_185 = arith.constant 127 : i32
    %409 = tpu.dynamic_rotate %405 by %c127_i32_185 dim 1 : vector<32x128xf32>, i32 -> vector<32x128xf32>
    %cst_186 = arith.constant 0.000000e+00 : f32
    %410 = vector.broadcast %cst_186 : f32 to vector<32x128xf32>
    %411 = arith.select %384, %409, %410 : vector<32x128xi1>, vector<32x128xf32>
    %412 = tpu.concatenate %408, %405, %411, %387 in 0 : vector<32x128xf32>, vector<32x128xf32>, vector<32x128xf32>, vector<1x128xf32> -> vector<97x128xf32>
    %c8 = arith.constant 8 : index
    %c0_187 = arith.constant 0 : index
    %c0_188 = arith.constant 0 : index
    %413 = vector.load %arg2[%c8, %c0_187, %c0_188] : memref<9x32x97xbf16, #tpu.memory_space<vmem>>, vector<1x32x97xbf16>
    %414 = vector.shape_cast %413 : vector<1x32x97xbf16> to vector<32x97xbf16>
    %415 = arith.truncf %412 : vector<97x128xf32> to vector<97x128xbf16>
    %cst_189 = arith.constant dense<0.000000e+00> : vector<32x128xf32>
    %416 = tpu.matmul %414, %415, %cst_189 {dimension_numbers = #tpu.dot_dimension_numbers<[1], [0], [0], [1], [0, 0, 1, 1], [], []>} : vector<32x97xbf16>, vector<97x128xbf16>, vector<32x128xf32> -> vector<32x128xf32>
    %417 = vector.extract_strided_slice %416 {offsets = [0, 0], sizes = [3, 128], strides = [1, 1]} : vector<32x128xf32> to vector<3x128xf32>
    %c0_190 = arith.constant 0 : index
    %c0_191 = arith.constant 0 : index
    %418 = vector.load %arg6[%c0_190, %c0_191] : memref<3x128xf32, #tpu.memory_space<vmem>>, vector<3x128xf32>
    tpu.vector_store %arg6[%c0_190, %c0_191], %417 {strides = array<i32>} : memref<3x128xf32, #tpu.memory_space<vmem>>, vector<3x128xf32>,
    return
  }
  func.func @transform_0(%arg0: i32) -> (i32, i32, i32) {
    %c0_i32 = arith.constant 0 : i32
    %c0_i32_0 = arith.constant 0 : i32
    %c0_i32_1 = arith.constant 0 : i32
    return %arg0, %c0_i32, %c0_i32_0 : i32, i32, i32
  }
  func.func @transform_1(%arg0: i32) -> (i32, i32, i32) {
    %c0_i32 = arith.constant 0 : i32
    %c0_i32_0 = arith.constant 0 : i32
    %c0_i32_1 = arith.constant 0 : i32
    %c0_i32_2 = arith.constant 0 : i32
    return %c0_i32, %c0_i32_0, %c0_i32_1 : i32, i32, i32
  }
  func.func @transform_2(%arg0: i32) -> (i32, i32, i32) {
    %c0_i32 = arith.constant 0 : i32
    %c0_i32_0 = arith.constant 0 : i32
    %c0_i32_1 = arith.constant 0 : i32
    %c0_i32_2 = arith.constant 0 : i32
    return %c0_i32, %c0_i32_0, %c0_i32_1 : i32, i32, i32
  }
  func.func @transform_3(%arg0: i32) -> (i32, i32) {
    %c0_i32 = arith.constant 0 : i32
    %c0_i32_0 = arith.constant 0 : i32
    %c0_i32_1 = arith.constant 0 : i32
    return %c0_i32, %c0_i32_0 : i32, i32
  }
  func.func @transform_4(%arg0: i32) -> (i32, i32) {
    %c0_i32 = arith.constant 0 : i32
    %c0_i32_0 = arith.constant 0 : i32
    %c0_i32_1 = arith.constant 0 : i32
    return %c0_i32, %c0_i32_0 : i32, i32
  }
  func.func @transform_5(%arg0: i32) -> (i32, i32) {
    %c0_i32 = arith.constant 0 : i32
    %c0_i32_0 = arith.constant 0 : i32
    return %c0_i32, %arg0 : i32, i32
  }
}

</mosaic_0001>

<llo_original>
// kernel: tpu_custom_call.1
$region0: #{tpu_custom_call.1}
  #allocation0 [shape = 'u32[]', space=smem, size = 0x4, offset = 0x4, fixed_abs, tag = 'smem constant byte address 0x4 - core index']
  #allocation1 [shape = 'u32[144,128]{1,0:T(1,128)}', space=vmem, size = 0x12000, scoped, tag = 'internal scratch']
  %s0 = inlined_call_operand.vmem [shape: f32[4,32,16], index: 0, kind: input, shape index: {}]
  %s1 = inlined_call_operand.vmem [shape: bf16[9,32,97], index: 1, kind: input, shape index: {}]
  %s2 = inlined_call_operand.hbm [shape: bf16[4,32,33], index: 2, kind: input, shape index: {}]
  %s3 = inlined_call_operand.vmem [shape: bf16[32,64], index: 3, kind: input, shape index: {}]
  %s4 = inlined_call_operand.vmem [shape: bf16[64,128], index: 4, kind: input, shape index: {}]
  %s5 = inlined_call_operand.hbm [shape: f32[3,256], index: 5, kind: output, shape index: {}]
  %s6 = sld [smem:[#allocation0]]
  $region57: #{tpu_custom_call.1} parent=0
    _
  %s8 = ssub.s32 1, %s6
  %s9 = scalar_select 0, %s8, %s6
  $region1: #{tpu_custom_call.1} parent=0
    #allocation2 [shape = 'u8[32768]{0}', space=vmem, size = 0x8000, scoped, tag = 'input window, operand 2, single buffered']
    #allocation3 [shape = 's32[2]{0}', space=sflag, size = 0x8, scoped, tag = 'scoped memory for tpu_custom_call.1']
    #allocation4 [shape = 's32[2]{0}', space=sflag, size = 0x8, scoped, tag = 'scoped memory for tpu_custom_call.1']
    #allocation5 [shape = 'u8[4096]{0}', space=vmem, size = 0x1000, scoped, tag = 'output window, operand 0']
    %10 = vsyncpa [#allocation3], 0
    %11 = vsyncpa [#allocation4], 0
    %s12 = scalar_lea.sflag [#allocation4], 1
    %13 = vsyncpa %s12, 0
    loop: start=0, step=1, limit=4
    $region2: #{tpu_custom_call.1} parent=1 // loop_pre_header
      _
    $region3: #{tpu_custom_call.1} parent=1 // loop_header
      %s15 = sphi 0, %s19
      %p16 = scmp.ge.s32.totalorder %s15, 4
      %s25 = sphi 0, %s27
      %s28 = sphi 0, %s25
      %s29 = sphi 0, %s28
      %s45 = sphi 0, %s29
      %s49 = sphi 0, %s49
      %s51 = sphi 0, %s49
      %s52 = sphi 0, %s51
      %s66 = sphi 0, %s52
      %s70 = sphi 0, %s70
      %s72 = sphi 0, %s70
      %s73 = sphi 0, %s72
      %s87 = sphi 0, %s73
      %s91 = sphi 0, %s91
      %s93 = sphi 0, %s91
      %s94 = sphi 0, %s93
      %s108 = sphi 0, %s94
      %s112 = sphi 0, %s112
      %s114 = sphi 0, %s112
      %s115 = sphi 0, %s114
      %s129 = sphi 0, %s115
      %s135 = sphi 0, %s137
      %s138 = sphi 0, %s135
      %s139 = sphi 0, %s138
      %s155 = sphi 0, %s139
    $region4: #{tpu_custom_call.1} parent=1 // loop_header_branch
      %18 = sbr.rel (%p16) target = $region8
    $region5: #{tpu_custom_call.1} parent=1 // loop_body
      %s20 = ssub.s32 %s15, 1
      %s21 = ssub.s32 %s15, 2
      %s22 = sadd.s32 %s15, 1
      %s23 = ssub.s32 %s15, %s22
      %p24 = scmp.eq.s32.totalorder %s23, 0
      %s26 = sadd.s32 %s25, 1
      %s27 = scalar_select %p24, %s25, %s26
      %p30 = pneg %p24
      %p31 = scmp.eq.s32.totalorder %s15, 1
      %p32 = por %p30, %p31
      %p33 = scmp.ne.s32.totalorder %s25, %s28
      %p34 = scmp.eq.s32.totalorder %s15, 0
      %p35 = por %p33, %p34
      %p36 = scmp.ne.s32.totalorder %s25, %s28
      %p37 = scmp.eq.s32.totalorder %s20, 1
      %p38 = por %p36, %p37
      %p39 = scmp.ne.s32.totalorder %s28, %s29
      %p40 = scmp.eq.s32.totalorder %s20, 0
      %p41 = por %p39, %p40
      %p42 = scmp.ne.s32.totalorder %s28, %s29
      %p43 = scmp.eq.s32.totalorder %s21, 1
      %p44 = por %p42, %p43
      %p46 = scmp.ne.s32.totalorder %s29, %s45
      %p47 = scmp.eq.s32.totalorder %s21, 0
      %p48 = por %p46, %p47
      %s50 = sadd.s32 %s49, 1
      %p53 = scmp.eq.s32.totalorder %s15, 1
      %p54 = scmp.ne.s32.totalorder %s49, %s51
      %p55 = scmp.eq.s32.totalorder %s15, 0
      %p56 = por %p54, %p55
      %p57 = scmp.ne.s32.totalorder %s49, %s51
      %p58 = scmp.eq.s32.totalorder %s20, 1
      %p59 = por %p57, %p58
      %p60 = scmp.ne.s32.totalorder %s51, %s52
      %p61 = scmp.eq.s32.totalorder %s20, 0
      %p62 = por %p60, %p61
      %p63 = scmp.ne.s32.totalorder %s51, %s52
      %p64 = scmp.eq.s32.totalorder %s21, 1
      %p65 = por %p63, %p64
      %p67 = scmp.ne.s32.totalorder %s52, %s66
      %p68 = scmp.eq.s32.totalorder %s21, 0
      %p69 = por %p67, %p68
      %s71 = sadd.s32 %s70, 1
      %p74 = scmp.eq.s32.totalorder %s15, 1
      %p75 = scmp.ne.s32.totalorder %s70, %s72
      %p76 = scmp.eq.s32.totalorder %s15, 0
      %p77 = por %p75, %p76
      %p78 = scmp.ne.s32.totalorder %s70, %s72
      %p79 = scmp.eq.s32.totalorder %s20, 1
      %p80 = por %p78, %p79
      %p81 = scmp.ne.s32.totalorder %s72, %s73
      %p82 = scmp.eq.s32.totalorder %s20, 0
      %p83 = por %p81, %p82
      %p84 = scmp.ne.s32.totalorder %s72, %s73
      %p85 = scmp.eq.s32.totalorder %s21, 1
      %p86 = por %p84, %p85
      %p88 = scmp.ne.s32.totalorder %s73, %s87
      %p89 = scmp.eq.s32.totalorder %s21, 0
      %p90 = por %p88, %p89
      %s92 = sadd.s32 %s91, 1
      %p95 = scmp.eq.s32.totalorder %s15, 1
      %p96 = scmp.ne.s32.totalorder %s91, %s93
      %p97 = scmp.eq.s32.totalorder %s15, 0
      %p98 = por %p96, %p97
      %p99 = scmp.ne.s32.totalorder %s91, %s93
      %p100 = scmp.eq.s32.totalorder %s20, 1
      %p101 = por %p99, %p100
      %p102 = scmp.ne.s32.totalorder %s93, %s94
      %p103 = scmp.eq.s32.totalorder %s20, 0
      %p104 = por %p102, %p103
      %p105 = scmp.ne.s32.totalorder %s93, %s94
      %p106 = scmp.eq.s32.totalorder %s21, 1
      %p107 = por %p105, %p106
      %p109 = scmp.ne.s32.totalorder %s94, %s108
      %p110 = scmp.eq.s32.totalorder %s21, 0
      %p111 = por %p109, %p110
      %s113 = sadd.s32 %s112, 1
      %p116 = scmp.eq.s32.totalorder %s15, 1
      %p117 = scmp.ne.s32.totalorder %s112, %s114
      %p118 = scmp.eq.s32.totalorder %s15, 0
      %p119 = por %p117, %p118
      %p120 = scmp.ne.s32.totalorder %s112, %s114
      %p121 = scmp.eq.s32.totalorder %s20, 1
      %p122 = por %p120, %p121
      %p123 = scmp.ne.s32.totalorder %s114, %s115
      %p124 = scmp.eq.s32.totalorder %s20, 0
      %p125 = por %p123, %p124
      %p126 = scmp.ne.s32.totalorder %s114, %s115
      %p127 = scmp.eq.s32.totalorder %s21, 1
      %p128 = por %p126, %p127
      %p130 = scmp.ne.s32.totalorder %s115, %s129
      %p131 = scmp.eq.s32.totalorder %s21, 0
      %p132 = por %p130, %p131
      %s133 = ssub.s32 %s15, %s22
      %p134 = scmp.eq.s32.totalorder %s133, 0
      %s136 = sadd.s32 %s135, 1
      %s137 = scalar_select %p134, %s135, %s136
      %p140 = pneg %p134
      %p141 = scmp.eq.s32.totalorder %s15, 1
      %p142 = por %p140, %p141
      %p143 = scmp.ne.s32.totalorder %s135, %s138
      %p144 = scmp.eq.s32.totalorder %s15, 0
      %p145 = por %p143, %p144
      %p146 = scmp.ne.s32.totalorder %s135, %s138
      %p147 = scmp.eq.s32.totalorder %s20, 1
      %p148 = por %p146, %p147
      %p149 = scmp.ne.s32.totalorder %s138, %s139
      %p150 = scmp.eq.s32.totalorder %s20, 0
      %p151 = por %p149, %p150
      %p152 = scmp.ne.s32.totalorder %s138, %s139
      %p153 = scmp.eq.s32.totalorder %s21, 1
      %p154 = por %p152, %p153
      %p156 = scmp.ne.s32.totalorder %s139, %s155
      %p157 = scmp.eq.s32.totalorder %s21, 0
      %p158 = por %p156, %p157
      %p159 = scmp.le.s32.totalorder 1, %s15
      %p160 = scmp.lt.s32.totalorder %s15, 3
      %p161 = pnand %p159, %p160
      %p162 = pneg %p161
      // Predicated region
      $region9: #{tpu_custom_call.1} parent=5 // pred_check
        _
      $region10: #{tpu_custom_call.1} parent=5 // pred_check_branch
        %164 = sbr.rel (%p161) target = $region12
      $region11: #{tpu_custom_call.1} parent=5 // pred_region
        %s165 = ssub.s32 %s15, 1
        // Predicated region
        $region13: #{tpu_custom_call.1} parent=11 // pred_check
          %p166 = pneg %p62
        $region14: #{tpu_custom_call.1} parent=11 // pred_check_branch
          %168 = sbr.rel (%p166) target = $region16
        $region15: #{tpu_custom_call.1} parent=11 // pred_region
          _
        $region16: #{tpu_custom_call.1} parent=11 // pred_fallthru
          _
        // Predicated region
        $region17: #{tpu_custom_call.1} parent=11 // pred_check
          %p169 = pneg %p83
        $region18: #{tpu_custom_call.1} parent=11 // pred_check_branch
          %171 = sbr.rel (%p169) target = $region20
        $region19: #{tpu_custom_call.1} parent=11 // pred_region
          %s173 = ssub.s32 1024, 1024
          %174 = vsyncadd [#allocation3], %s173
          %s175 = sshll.u32 [#allocation2], 4
          %s176 = int_to_ptr.vmem [resolvable:$true] %s175
          %181 = dma.hbm_to_vmem [thread:$0]  %s2, 1024, %s176, [#allocation3], 64, 64, 4
        $region20: #{tpu_custom_call.1} parent=11 // pred_fallthru
          _
        // Predicated region
        $region21: #{tpu_custom_call.1} parent=11 // pred_check
          %p182 = pneg %p104
        $region22: #{tpu_custom_call.1} parent=11 // pred_check_branch
          %184 = sbr.rel (%p182) target = $region24
        $region23: #{tpu_custom_call.1} parent=11 // pred_region
          _
        $region24: #{tpu_custom_call.1} parent=11 // pred_fallthru
          _
        // Predicated region
        $region25: #{tpu_custom_call.1} parent=11 // pred_check
          %p185 = pneg %p125
        $region26: #{tpu_custom_call.1} parent=11 // pred_check_branch
          %187 = sbr.rel (%p185) target = $region28
        $region27: #{tpu_custom_call.1} parent=11 // pred_region
          _
        $region28: #{tpu_custom_call.1} parent=11 // pred_fallthru
          _
      $region12: #{tpu_custom_call.1} parent=5 // pred_fallthru
        _
      %p188 = scmp.lt.s32.totalorder %s15, 2
      // Predicated region
      $region29: #{tpu_custom_call.1} parent=5 // pred_check
        %p189 = pneg %p188
      $region30: #{tpu_custom_call.1} parent=5 // pred_check_branch
        %191 = sbr.rel (%p189) target = $region32
      $region31: #{tpu_custom_call.1} parent=5 // pred_region
        // Predicated region
        $region33: #{tpu_custom_call.1} parent=31 // pred_check
          %p192 = pneg %p35
        $region34: #{tpu_custom_call.1} parent=31 // pred_check_branch
          %194 = sbr.rel (%p192) target = $region36
        $region35: #{tpu_custom_call.1} parent=31 // pred_region
          %s195 = smul.u32 2, %s15
          %p196 = scmp.lt.s32.totalorder %s195, 3
          %s197 = scalar_select %p196, %s195, 3
          %s198 = smul.addr %s197, 4
          %s199 = smul.addr %s198, 8
          %s200 = scalar_lea.vmem %s0, %s199
          %s201 = smul.u32 2, %s15
        $region36: #{tpu_custom_call.1} parent=31 // pred_fallthru
          _
      $region32: #{tpu_custom_call.1} parent=5 // pred_fallthru
        _
      %p202 = scmp.le.s32.totalorder 1, %s15
      %p203 = scmp.lt.s32.totalorder %s15, 3
      %p204 = pnand %p202, %p203
      %p205 = pneg %p204
      // Predicated region
      $region37: #{tpu_custom_call.1} parent=5 // pred_check
        _
      $region38: #{tpu_custom_call.1} parent=5 // pred_check_branch
        %207 = sbr.rel (%p204) target = $region40
      $region39: #{tpu_custom_call.1} parent=5 // pred_region
        %s208 = ssub.s32 %s15, 1
        // Predicated region
        $region41: #{tpu_custom_call.1} parent=39 // pred_check
          %p209 = pneg %p83
        $region42: #{tpu_custom_call.1} parent=39 // pred_check_branch
          %211 = sbr.rel (%p209) target = $region44
        $region43: #{tpu_custom_call.1} parent=39 // pred_region
          %212 = dma.done [#allocation3], 1024
        $region44: #{tpu_custom_call.1} parent=39 // pred_fallthru
          _
        %s213 = smul.u32 2, %s20
        %p214 = scmp.lt.s32.totalorder %s213, 3
        %s215 = scalar_select %p214, %s213, 3
        %s216 = smul.addr %s215, 4
        %s217 = smul.addr %s216, 8
        %s218 = scalar_lea.vmem %s0, %s217
        %p219 = pneg %p41
        %p220 = pneg %p38
        %p221 = pneg %p62
        %p222 = pneg %p59
        %p223 = pneg %p83
        %p224 = pneg %p80
        %p225 = pneg %p104
        %p226 = pneg %p101
        %p227 = pneg %p125
        %p228 = pneg %p122
        %p229 = pneg %p151
        %p230 = pneg %p148
        %s231 = sand.u32 %s138, 1
        %s232 = scalar_lea.sflag [#allocation4], %s231
        %s233 = sand.u32 %s138, 1
        %s234 = smul.addr %s233, 4
        %s235 = scalar_lea.vmem [#allocation5], %s234
        %s236 = smul.u32 2, %s20
        %p237 = scmp.lt.s32.totalorder %s236, 3
        %s238 = scalar_select %p237, %s236, 3
        %s239 = smul.addr %s238, 4
        %s240 = smul.addr %s239, 8
        %s241 = scalar_lea.vmem %s0, %s240
        %s242 = smul.u32 2, %s20
        %v244 = vld [vmem:[%s241] sm:$0xff]
        %v245 = vld [vmem:[%s241 + $0x8] sm:$0xff]
        %v246 = vld [vmem:[%s241 + $0x10] sm:$0xff]
        %v247 = vld [vmem:[%s241 + $0x18] sm:$0xff]
        %s248 = scalar_lea.vmem %s241, 32
        %v249 = vld [vmem:[%s248] sm:$0xff]
        %v250 = vld [vmem:[%s248 + $0x8] sm:$0xff]
        %v251 = vld [vmem:[%s248 + $0x10] sm:$0xff]
        %v252 = vld [vmem:[%s248 + $0x18] sm:$0xff]
        %257 = vrot.lane.b32.xlu0 %v249, 16
        %v258 = vpop.permute.xlu0 %257
        %259 = vrot.lane.b32.xlu0 %v250, 16
        %v260 = vpop.permute.xlu0 %259
        %261 = vrot.lane.b32.xlu0 %v251, 16
        %v262 = vpop.permute.xlu0 %261
        %263 = vrot.lane.b32.xlu0 %v252, 16
        %v264 = vpop.permute.xlu0 %263
        %vm269 = vcmask 130048
        %v270 = vsel %vm269, %v244, %v258
        %v271 = vsel %vm269, %v245, %v260
        %v272 = vsel %vm269, %v246, %v262
        %v273 = vsel %vm269, %v247, %v264
        %vm274 = vcmask 1047808
        %275 = vrot.lane.b32.xlu0 %v270, 32
        %v276 = vpop.permute.xlu0 %275
        %v277 = vsel %vm274, %v276, %v270
        %278 = vrot.lane.b32.xlu0 %v271, 32
        %v279 = vpop.permute.xlu0 %278
        %v280 = vsel %vm274, %v279, %v271
        %281 = vrot.lane.b32.xlu0 %v272, 32
        %v282 = vpop.permute.xlu0 %281
        %v283 = vsel %vm274, %v282, %v272
        %284 = vrot.lane.b32.xlu0 %v273, 32
        %v285 = vpop.permute.xlu0 %284
        %v286 = vsel %vm274, %v285, %v273
        %287 = vrot.lane.b32.xlu0 %v277, 32
        %v288 = vpop.permute.xlu0 %287
        %289 = vrot.lane.b32.xlu0 %v280, 32
        %v290 = vpop.permute.xlu0 %289
        %291 = vrot.lane.b32.xlu0 %v283, 32
        %v292 = vpop.permute.xlu0 %291
        %293 = vrot.lane.b32.xlu0 %v286, 32
        %v294 = vpop.permute.xlu0 %293
        %v295 = vsel %vm274, %v288, %v270
        %v296 = vsel %vm274, %v290, %v271
        %v297 = vsel %vm274, %v292, %v272
        %v298 = vsel %vm274, %v294, %v273
        %v299 = vlaneseq
        %v300 = vand.u32 %v299, 127
        %vm301 = vcmp.lt.s32.totalorder %v300, 0
        %v302 = vsub.s32 0, %v300
        %v303 = vsel %vm301, %v302, %v300
        %v304 = vshrl.u32 %v303, 4
        %v305 = vand.u32 %v303, 15
        %v306 = vsub.s32 0, %v305
        %v307 = vsel %vm301, %v306, %v305
        %vm308 = vcmp.ne.s32.totalorder %v307, 0
        %vm309 = vcmp.lt.s32.totalorder %v307, 0
        %vm310 = vmand %vm309, %vm308
        %v311 = vadd.s32 %v307, 16
        %v312 = vsel %vm310, %v311, %v307
        %v313 = vadd.s32 %v312, 4294967295
        %vm314 = vcmp.ge.s32.totalorder %v313, 0
        %vm315 = vcmp.lt.s32.totalorder %v313, 16
        %vm316 = vmand %vm314, %vm315
        %321 = vrot.lane.b32.xlu0 %v295, 97
        %v322 = vpop.permute.xlu0 %321
        %323 = vrot.lane.b32.xlu0 %v296, 97
        %v324 = vpop.permute.xlu0 %323
        %325 = vrot.lane.b32.xlu0 %v297, 97
        %v326 = vpop.permute.xlu0 %325
        %327 = vrot.lane.b32.xlu0 %v298, 97
        %v328 = vpop.permute.xlu0 %327
        %v333 = vsel %vm316, %v322, 0.0
        %v334 = vsel %vm316, %v324, 0.0
        %v335 = vsel %vm316, %v326, 0.0
        %v336 = vsel %vm316, %v328, 0.0
        %v337 = vadd.s32 %v312, 1
        %vm338 = vcmp.ge.s32.totalorder %v337, 0
        %vm339 = vcmp.lt.s32.totalorder %v337, 16
        %vm340 = vmand %vm338, %vm339
        %341 = vrot.lane.b32.xlu0 %v295, 127
        %v342 = vpop.permute.xlu0 %341
        %343 = vrot.lane.b32.xlu0 %v296, 127
        %v344 = vpop.permute.xlu0 %343
        %345 = vrot.lane.b32.xlu0 %v297, 127
        %v346 = vpop.permute.xlu0 %345
        %347 = vrot.lane.b32.xlu0 %v298, 127
        %v348 = vpop.permute.xlu0 %347
        %v353 = vsel %vm340, %v342, 0.0
        %v354 = vsel %vm340, %v344, 0.0
        %v355 = vsel %vm340, %v346, 0.0
        %v356 = vsel %vm340, %v348, 0.0
        %v357 = vld [vmem:[%s1] sm:$0xf]
        %v358 = vld [vmem:[%s1 + $0x4] sm:$0xf]
        %v359 = vld [vmem:[%s1 + $0x8] sm:$0xf]
        %v360 = vld [vmem:[%s1 + $0xc] sm:$0xf]
        %v361 = vpack.c.bf16 %v334, %v333
        %v362 = vpack.c.bf16 %v336, %v335
        %v363 = vpack.c.bf16 %v271, %v270
        %v364 = vpack.c.bf16 %v273, %v272
        %v365 = vpack.c.bf16 %v354, %v353
        %v366 = vpack.c.bf16 %v356, %v355
        %v367 = vpack.c.bf16 1.0, 1.0
        %v372 = vunpack.c.l.b16 %v357
        %v373 = vunpack.c.l.b16 %v358
        %v374 = vunpack.c.l.b16 %v359
        %v375 = vunpack.c.l.b16 %v360
        %v376 = vpack.c.b16 %v373, %v372
        %v377 = vpack.c.b16 %v375, %v374
        %vm378 = vcmask 793600
        %v380 = vsel %vm378, %v376, 0
        %v383 = vsel %vm378, %v377, 0
        %vm385 = vcmask 1040384
        %v386 = vsel 0, 4294967295, 65535
        %v387 = vsel %vm385, %v386, 0
        %v389 = vand.u32 %v367, %v387
        %391 = vmatprep.subr.bf16.mxu0 0
        %392 = vmatpush1.bf16.msra.mxu0 %v361
        %393 = vmatprep.subr.bf16.mxu0 0
        %394 = vmatpush1.bf16.msra.mxu0 %v362
        %395 = vmatprep.subr.bf16.mxu0 0
        %396 = vmatpush1.bf16.msra.mxu0 %v363
        %397 = vmatprep.subr.bf16.mxu0 0
        %398 = vmatpush1.bf16.msra.mxu0 %v364
        %399 = vmatprep.subr.bf16.mxu0 0
        %400 = vmatpush1.bf16.msra.mxu0 %v365
        %401 = vmatprep.subr.bf16.mxu0 0
        %402 = vmatpush1.bf16.msra.mxu0 %v366
        %403 = vmatprep.subr.bf16.mxu0 0
        %404 = vmatpush1.bf16.msra.mxu0 %v389
        %405 = vmatprep.subr.bf16.mxu0 0
        %406 = vmatpush1.bf16.msra.mxu0 0
        %407 = vmatprep.subr.bf16.mxu0 0
        %408 = vmatpush1.bf16.msra.mxu0 0
        %409 = vmatprep.subr.bf16.mxu0 0
        %410 = vmatpush1.bf16.msra.mxu0 0
        %411 = vmatprep.subr.bf16.mxu0 0
        %412 = vmatpush1.bf16.msra.mxu0 0
        %413 = vmatprep.subr.bf16.mxu0 0
        %414 = vmatpush1.bf16.msra.mxu0 0
        %415 = vmatprep.subr.bf16.mxu0 0
        %416 = vmatpush1.bf16.msra.mxu0 0
        %417 = vmatprep.subr.bf16.mxu0 0
        %418 = vmatpush1.bf16.msra.mxu0 0
        %419 = vmatprep.subr.bf16.mxu0 0
        %420 = vmatpush1.bf16.msra.mxu0 0
        %421 = vmatprep.subr.bf16.mxu0 0
        %422 = vmatpush1.bf16.msra.mxu0 0
        %423 = vmatprep.mubr.bf16.mxu0 0
        %424 = vmatmul.mubr.bf16.gmra.mrb[0].mxu0 %v380
        %v425 = vpop.f32.mrb[0].mxu0
        %v426 = vadd.f32 0.0, %v425
        %v427 = vpop.f32.mrb[0].mxu0
        %v428 = vpop.f32.mrb[0].mxu0
        %v429 = vadd.f32 0.0, %v428
        %v430 = vpop.f32.mrb[0].mxu0
        %431 = vmatprep.mubr.bf16.mxu0 0
        %432 = vmatmul.mubr.bf16.gmra.mrb[0].mxu0 %v383
        %v433 = vpop.f32.mrb[0].mxu0
        %v434 = vadd.f32 0.0, %v433
        %v435 = vpop.f32.mrb[0].mxu0
        %v436 = vpop.f32.mrb[0].mxu0
        %v437 = vadd.f32 0.0, %v436
        %v438 = vpop.f32.mrb[0].mxu0
        %439 = vdwg.mxu0
        %v440 = vmax.f32 %v426, 0.0
        %v441 = vmax.f32 %v429, 0.0
        %v442 = vmax.f32 %v434, 0.0
        %v443 = vmax.f32 %v437, 0.0
        %v444 = vmax.f32 %v440, 0.0
        %v445 = vmax.f32 %v441, 0.0
        %v446 = vmax.f32 %v442, 0.0
        %v447 = vmax.f32 %v443, 0.0
        %448 = vrot.lane.b32.xlu0 %v444, 32
        %v449 = vpop.permute.xlu0 %448
        %v450 = vsel %vm274, %v449, %v444
        %451 = vrot.lane.b32.xlu0 %v445, 32
        %v452 = vpop.permute.xlu0 %451
        %v453 = vsel %vm274, %v452, %v445
        %454 = vrot.lane.b32.xlu0 %v446, 32
        %v455 = vpop.permute.xlu0 %454
        %v456 = vsel %vm274, %v455, %v446
        %457 = vrot.lane.b32.xlu0 %v447, 32
        %v458 = vpop.permute.xlu0 %457
        %v459 = vsel %vm274, %v458, %v447
        %460 = vrot.lane.b32.xlu0 %v450, 32
        %v461 = vpop.permute.xlu0 %460
        %462 = vrot.lane.b32.xlu0 %v453, 32
        %v463 = vpop.permute.xlu0 %462
        %464 = vrot.lane.b32.xlu0 %v456, 32
        %v465 = vpop.permute.xlu0 %464
        %466 = vrot.lane.b32.xlu0 %v459, 32
        %v467 = vpop.permute.xlu0 %466
        %v468 = vsel %vm274, %v461, %v444
        %v469 = vsel %vm274, %v463, %v445
        %v470 = vsel %vm274, %v465, %v446
        %v471 = vsel %vm274, %v467, %v447
        %v472 = vadd.s32 %v312, 4294967293
        %vm473 = vcmp.ge.s32.totalorder %v472, 0
        %vm474 = vcmp.lt.s32.totalorder %v472, 16
        %vm475 = vmand %vm473, %vm474
        %480 = vrot.lane.b32.xlu0 %v468, 99
        %v481 = vpop.permute.xlu0 %480
        %482 = vrot.lane.b32.xlu0 %v469, 99
        %v483 = vpop.permute.xlu0 %482
        %484 = vrot.lane.b32.xlu0 %v470, 99
        %v485 = vpop.permute.xlu0 %484
        %486 = vrot.lane.b32.xlu0 %v471, 99
        %v487 = vpop.permute.xlu0 %486
        %v492 = vsel %vm475, %v481, 0.0
        %v493 = vsel %vm475, %v483, 0.0
        %v494 = vsel %vm475, %v485, 0.0
        %v495 = vsel %vm475, %v487, 0.0
        %v496 = vadd.s32 %v312, 3
        %vm497 = vcmp.ge.s32.totalorder %v496, 0
        %vm498 = vcmp.lt.s32.totalorder %v496, 16
        %vm499 = vmand %vm497, %vm498
        %500 = vrot.lane.b32.xlu0 %v468, 125
        %v501 = vpop.permute.xlu0 %500
        %502 = vrot.lane.b32.xlu0 %v469, 125
        %v503 = vpop.permute.xlu0 %502
        %504 = vrot.lane.b32.xlu0 %v470, 125
        %v505 = vpop.permute.xlu0 %504
        %506 = vrot.lane.b32.xlu0 %v471, 125
        %v507 = vpop.permute.xlu0 %506
        %v512 = vsel %vm499, %v501, 0.0
        %v513 = vsel %vm499, %v503, 0.0
        %v514 = vsel %vm499, %v505, 0.0
        %v515 = vsel %vm499, %v507, 0.0
        %s516 = scalar_lea.vmem %s1, 16
        %v517 = vld [vmem:[%s516] sm:$0xf]
        %v518 = vld [vmem:[%s516 + $0x4] sm:$0xf]
        %v519 = vld [vmem:[%s516 + $0x8] sm:$0xf]
        %v520 = vld [vmem:[%s516 + $0xc] sm:$0xf]
        %v521 = vpack.c.bf16 %v493, %v492
        %v522 = vpack.c.bf16 %v495, %v494
        %v523 = vpack.c.bf16 %v445, %v444
        %v524 = vpack.c.bf16 %v447, %v446
        %v525 = vpack.c.bf16 %v513, %v512
        %v526 = vpack.c.bf16 %v515, %v514
        %v531 = vunpack.c.l.b16 %v517
        %v532 = vunpack.c.l.b16 %v518
        %v533 = vunpack.c.l.b16 %v519
        %v534 = vunpack.c.l.b16 %v520
        %v535 = vpack.c.b16 %v532, %v531
        %v536 = vpack.c.b16 %v534, %v533
        %v538 = vsel %vm378, %v535, 0
        %v541 = vsel %vm378, %v536, 0
        %543 = vmatprep.subr.bf16.mxu0 0
        %544 = vmatpush1.bf16.msra.mxu0 %v521
        %545 = vmatprep.subr.bf16.mxu0 0
        %546 = vmatpush1.bf16.msra.mxu0 %v522
        %547 = vmatprep.subr.bf16.mxu0 0
        %548 = vmatpush1.bf16.msra.mxu0 %v523
        %549 = vmatprep.subr.bf16.mxu0 0
        %550 = vmatpush1.bf16.msra.mxu0 %v524
        %551 = vmatprep.subr.bf16.mxu0 0
        %552 = vmatpush1.bf16.msra.mxu0 %v525
        %553 = vmatprep.subr.bf16.mxu0 0
        %554 = vmatpush1.bf16.msra.mxu0 %v526
        %555 = vmatprep.subr.bf16.mxu0 0
        %556 = vmatpush1.bf16.msra.mxu0 %v389
        %557 = vmatprep.subr.bf16.mxu0 0
        %558 = vmatpush1.bf16.msra.mxu0 0
        %559 = vmatprep.subr.bf16.mxu0 0
        %560 = vmatpush1.bf16.msra.mxu0 0
        %561 = vmatprep.subr.bf16.mxu0 0
        %562 = vmatpush1.bf16.msra.mxu0 0
        %563 = vmatprep.subr.bf16.mxu0 0
        %564 = vmatpush1.bf16.msra.mxu0 0
        %565 = vmatprep.subr.bf16.mxu0 0
        %566 = vmatpush1.bf16.msra.mxu0 0
        %567 = vmatprep.subr.bf16.mxu0 0
        %568 = vmatpush1.bf16.msra.mxu0 0
        %569 = vmatprep.subr.bf16.mxu0 0
        %570 = vmatpush1.bf16.msra.mxu0 0
        %571 = vmatprep.subr.bf16.mxu0 0
        %572 = vmatpush1.bf16.msra.mxu0 0
        %573 = vmatprep.subr.bf16.mxu0 0
        %574 = vmatpush1.bf16.msra.mxu0 0
        %575 = vmatprep.mubr.bf16.mxu0 0
        %576 = vmatmul.mubr.bf16.gmra.mrb[0].mxu0 %v538
        %v577 = vpop.f32.mrb[0].mxu0
        %v578 = vadd.f32 0.0, %v577
        %v579 = vpop.f32.mrb[0].mxu0
        %v580 = vpop.f32.mrb[0].mxu0
        %v581 = vadd.f32 0.0, %v580
        %v582 = vpop.f32.mrb[0].mxu0
        %583 = vmatprep.mubr.bf16.mxu0 0
        %584 = vmatmul.mubr.bf16.gmra.mrb[0].mxu0 %v541
        %v585 = vpop.f32.mrb[0].mxu0
        %v586 = vadd.f32 0.0, %v585
        %v587 = vpop.f32.mrb[0].mxu0
        %v588 = vpop.f32.mrb[0].mxu0
        %v589 = vadd.f32 0.0, %v588
        %v590 = vpop.f32.mrb[0].mxu0
        %591 = vdwg.mxu0
        %v592 = vmax.f32 %v578, 0.0
        %v593 = vmax.f32 %v581, 0.0
        %v594 = vmax.f32 %v586, 0.0
        %v595 = vmax.f32 %v589, 0.0
        %v596 = vld [vmem:[#allocation2] sm:$0xf]
        %v597 = vld [vmem:[#allocation2 + $0x4] sm:$0xf]
        %v598 = vld [vmem:[#allocation2 + $0x8] sm:$0xf]
        %v599 = vld [vmem:[#allocation2 + $0xc] sm:$0xf]
        %v600 = vpack.c.bf16 %v593, %v592
        %v601 = vpack.c.bf16 %v595, %v594
        %v606 = vunpack.c.l.b16 %v596
        %v607 = vunpack.c.l.b16 %v597
        %v608 = vunpack.c.l.b16 %v598
        %v609 = vunpack.c.l.b16 %v599
        %v610 = vpack.c.b16 %v607, %v606
        %v611 = vpack.c.b16 %v609, %v608
        %vm612 = vcmask 269312
        %v614 = vsel %vm612, %v610, 0
        %v617 = vsel %vm612, %v611, 0
        %619 = vmatprep.subr.bf16.mxu0 0
        %620 = vmatpush1.bf16.msra.mxu0 %v600
        %621 = vmatprep.subr.bf16.mxu0 0
        %622 = vmatpush1.bf16.msra.mxu0 %v601
        %623 = vmatprep.subr.bf16.mxu0 0
        %624 = vmatpush1.bf16.msra.mxu0 %v389
        %625 = vmatprep.subr.bf16.mxu0 0
        %626 = vmatpush1.bf16.msra.mxu0 0
        %627 = vmatprep.subr.bf16.mxu0 0
        %628 = vmatpush1.bf16.msra.mxu0 0
        %629 = vmatprep.subr.bf16.mxu0 0
        %630 = vmatpush1.bf16.msra.mxu0 0
        %631 = vmatprep.subr.bf16.mxu0 0
        %632 = vmatpush1.bf16.msra.mxu0 0
        %633 = vmatprep.subr.bf16.mxu0 0
        %634 = vmatpush1.bf16.msra.mxu0 0
        %635 = vmatprep.subr.bf16.mxu0 0
        %636 = vmatpush1.bf16.msra.mxu0 0
        %637 = vmatprep.subr.bf16.mxu0 0
        %638 = vmatpush1.bf16.msra.mxu0 0
        %639 = vmatprep.subr.bf16.mxu0 0
        %640 = vmatpush1.bf16.msra.mxu0 0
        %641 = vmatprep.subr.bf16.mxu0 0
        %642 = vmatpush1.bf16.msra.mxu0 0
        %643 = vmatprep.subr.bf16.mxu0 0
        %644 = vmatpush1.bf16.msra.mxu0 0
        %645 = vmatprep.subr.bf16.mxu0 0
        %646 = vmatpush1.bf16.msra.mxu0 0
        %647 = vmatprep.subr.bf16.mxu0 0
        %648 = vmatpush1.bf16.msra.mxu0 0
        %649 = vmatprep.subr.bf16.mxu0 0
        %650 = vmatpush1.bf16.msra.mxu0 0
        %651 = vmatprep.mubr.bf16.mxu0 0
        %652 = vmatmul.mubr.bf16.gmra.mrb[0].mxu0 %v614
        %v653 = vpop.f32.mrb[0].mxu0
        %v654 = vadd.f32 %v440, %v653
        %v655 = vpop.f32.mrb[0].mxu0
        %v656 = vpop.f32.mrb[0].mxu0
        %v657 = vadd.f32 %v441, %v656
        %v658 = vpop.f32.mrb[0].mxu0
        %659 = vmatprep.mubr.bf16.mxu0 0
        %660 = vmatmul.mubr.bf16.gmra.mrb[0].mxu0 %v617
        %v661 = vpop.f32.mrb[0].mxu0
        %v662 = vadd.f32 %v442, %v661
        %v663 = vpop.f32.mrb[0].mxu0
        %v664 = vpop.f32.mrb[0].mxu0
        %v665 = vadd.f32 %v443, %v664
        %v666 = vpop.f32.mrb[0].mxu0
        %667 = vdwg.mxu0
        %v668 = vmax.f32 %v654, 0.0
        %v669 = vmax.f32 %v657, 0.0
        %v670 = vmax.f32 %v662, 0.0
        %v671 = vmax.f32 %v665, 0.0
        %672 = vrot.lane.b32.xlu0 %v668, 32
        %v673 = vpop.permute.xlu0 %672
        %v674 = vsel %vm274, %v673, %v668
        %675 = vrot.lane.b32.xlu0 %v669, 32
        %v676 = vpop.permute.xlu0 %675
        %v677 = vsel %vm274, %v676, %v669
        %678 = vrot.lane.b32.xlu0 %v670, 32
        %v679 = vpop.permute.xlu0 %678
        %v680 = vsel %vm274, %v679, %v670
        %681 = vrot.lane.b32.xlu0 %v671, 32
        %v682 = vpop.permute.xlu0 %681
        %v683 = vsel %vm274, %v682, %v671
        %684 = vrot.lane.b32.xlu0 %v674, 32
        %v685 = vpop.permute.xlu0 %684
        %686 = vrot.lane.b32.xlu0 %v677, 32
        %v687 = vpop.permute.xlu0 %686
        %688 = vrot.lane.b32.xlu0 %v680, 32
        %v689 = vpop.permute.xlu0 %688
        %690 = vrot.lane.b32.xlu0 %v683, 32
        %v691 = vpop.permute.xlu0 %690
        %v692 = vsel %vm274, %v685, %v668
        %v693 = vsel %vm274, %v687, %v669
        %v694 = vsel %vm274, %v689, %v670
        %v695 = vsel %vm274, %v691, %v671
        %700 = vrot.lane.b32.xlu0 %v692, 97
        %v701 = vpop.permute.xlu0 %700
        %702 = vrot.lane.b32.xlu0 %v693, 97
        %v703 = vpop.permute.xlu0 %702
        %704 = vrot.lane.b32.xlu0 %v694, 97
        %v705 = vpop.permute.xlu0 %704
        %706 = vrot.lane.b32.xlu0 %v695, 97
        %v707 = vpop.permute.xlu0 %706
        %v712 = vsel %vm316, %v701, 0.0
        %v713 = vsel %vm316, %v703, 0.0
        %v714 = vsel %vm316, %v705, 0.0
        %v715 = vsel %vm316, %v707, 0.0
        %716 = vrot.lane.b32.xlu0 %v692, 127
        %v717 = vpop.permute.xlu0 %716
        %718 = vrot.lane.b32.xlu0 %v693, 127
        %v719 = vpop.permute.xlu0 %718
        %720 = vrot.lane.b32.xlu0 %v694, 127
        %v721 = vpop.permute.xlu0 %720
        %722 = vrot.lane.b32.xlu0 %v695, 127
        %v723 = vpop.permute.xlu0 %722
        %v728 = vsel %vm340, %v717, 0.0
        %v729 = vsel %vm340, %v719, 0.0
        %v730 = vsel %vm340, %v721, 0.0
        %v731 = vsel %vm340, %v723, 0.0
        %s732 = scalar_lea.vmem %s1, 32
        %v733 = vld [vmem:[%s732] sm:$0xf]
        %v734 = vld [vmem:[%s732 + $0x4] sm:$0xf]
        %v735 = vld [vmem:[%s732 + $0x8] sm:$0xf]
        %v736 = vld [vmem:[%s732 + $0xc] sm:$0xf]
        %v737 = vpack.c.bf16 %v713, %v712
        %v738 = vpack.c.bf16 %v715, %v714
        %v739 = vpack.c.bf16 %v669, %v668
        %v740 = vpack.c.bf16 %v671, %v670
        %v741 = vpack.c.bf16 %v729, %v728
        %v742 = vpack.c.bf16 %v731, %v730
        %v747 = vunpack.c.l.b16 %v733
        %v748 = vunpack.c.l.b16 %v734
        %v749 = vunpack.c.l.b16 %v735
        %v750 = vunpack.c.l.b16 %v736
        %v751 = vpack.c.b16 %v748, %v747
        %v752 = vpack.c.b16 %v750, %v749
        %v754 = vsel %vm378, %v751, 0
        %v757 = vsel %vm378, %v752, 0
        %759 = vmatprep.subr.bf16.mxu0 0
        %760 = vmatpush1.bf16.msra.mxu0 %v737
        %761 = vmatprep.subr.bf16.mxu0 0
        %762 = vmatpush1.bf16.msra.mxu0 %v738
        %763 = vmatprep.subr.bf16.mxu0 0
        %764 = vmatpush1.bf16.msra.mxu0 %v739
        %765 = vmatprep.subr.bf16.mxu0 0
        %766 = vmatpush1.bf16.msra.mxu0 %v740
        %767 = vmatprep.subr.bf16.mxu0 0
        %768 = vmatpush1.bf16.msra.mxu0 %v741
        %769 = vmatprep.subr.bf16.mxu0 0
        %770 = vmatpush1.bf16.msra.mxu0 %v742
        %771 = vmatprep.subr.bf16.mxu0 0
        %772 = vmatpush1.bf16.msra.mxu0 %v389
        %773 = vmatprep.subr.bf16.mxu0 0
        %774 = vmatpush1.bf16.msra.mxu0 0
        %775 = vmatprep.subr.bf16.mxu0 0
        %776 = vmatpush1.bf16.msra.mxu0 0
        %777 = vmatprep.subr.bf16.mxu0 0
        %778 = vmatpush1.bf16.msra.mxu0 0
        %779 = vmatprep.subr.bf16.mxu0 0
        %780 = vmatpush1.bf16.msra.mxu0 0
        %781 = vmatprep.subr.bf16.mxu0 0
        %782 = vmatpush1.bf16.msra.mxu0 0
        %783 = vmatprep.subr.bf16.mxu0 0
        %784 = vmatpush1.bf16.msra.mxu0 0
        %785 = vmatprep.subr.bf16.mxu0 0
        %786 = vmatpush1.bf16.msra.mxu0 0
        %787 = vmatprep.subr.bf16.mxu0 0
        %788 = vmatpush1.bf16.msra.mxu0 0
        %789 = vmatprep.subr.bf16.mxu0 0
        %790 = vmatpush1.bf16.msra.mxu0 0
        %791 = vmatprep.mubr.bf16.mxu0 0
        %792 = vmatmul.mubr.bf16.gmra.mrb[0].mxu0 %v754
        %v793 = vpop.f32.mrb[0].mxu0
        %v794 = vadd.f32 0.0, %v793
        %v795 = vpop.f32.mrb[0].mxu0
        %v796 = vpop.f32.mrb[0].mxu0
        %v797 = vadd.f32 0.0, %v796
        %v798 = vpop.f32.mrb[0].mxu0
        %799 = vmatprep.mubr.bf16.mxu0 0
        %800 = vmatmul.mubr.bf16.gmra.mrb[0].mxu0 %v757
        %v801 = vpop.f32.mrb[0].mxu0
        %v802 = vadd.f32 0.0, %v801
        %v803 = vpop.f32.mrb[0].mxu0
        %v804 = vpop.f32.mrb[0].mxu0
        %v805 = vadd.f32 0.0, %v804
        %v806 = vpop.f32.mrb[0].mxu0
        %807 = vdwg.mxu0
        %v808 = vmax.f32 %v794, 0.0
        %v809 = vmax.f32 %v797, 0.0
        %v810 = vmax.f32 %v802, 0.0
        %v811 = vmax.f32 %v805, 0.0
        %s812 = scalar_lea.vmem [#allocation2], 16
        %v813 = vld [vmem:[%s812] sm:$0xf]
        %v814 = vld [vmem:[%s812 + $0x4] sm:$0xf]
        %v815 = vld [vmem:[%s812 + $0x8] sm:$0xf]
        %v816 = vld [vmem:[%s812 + $0xc] sm:$0xf]
        %v817 = vpack.c.bf16 %v809, %v808
        %v818 = vpack.c.bf16 %v811, %v810
        %v823 = vunpack.c.l.b16 %v813
        %v824 = vunpack.c.l.b16 %v814
        %v825 = vunpack.c.l.b16 %v815
        %v826 = vunpack.c.l.b16 %v816
        %v827 = vpack.c.b16 %v824, %v823
        %v828 = vpack.c.b16 %v826, %v825
        %v830 = vsel %vm612, %v827, 0
        %v833 = vsel %vm612, %v828, 0
        %835 = vmatprep.subr.bf16.mxu0 0
        %836 = vmatpush1.bf16.msra.mxu0 %v817
        %837 = vmatprep.subr.bf16.mxu0 0
        %838 = vmatpush1.bf16.msra.mxu0 %v818
        %839 = vmatprep.subr.bf16.mxu0 0
        %840 = vmatpush1.bf16.msra.mxu0 %v389
        %841 = vmatprep.subr.bf16.mxu0 0
        %842 = vmatpush1.bf16.msra.mxu0 0
        %843 = vmatprep.subr.bf16.mxu0 0
        %844 = vmatpush1.bf16.msra.mxu0 0
        %845 = vmatprep.subr.bf16.mxu0 0
        %846 = vmatpush1.bf16.msra.mxu0 0
        %847 = vmatprep.subr.bf16.mxu0 0
        %848 = vmatpush1.bf16.msra.mxu0 0
        %849 = vmatprep.subr.bf16.mxu0 0
        %850 = vmatpush1.bf16.msra.mxu0 0
        %851 = vmatprep.subr.bf16.mxu0 0
        %852 = vmatpush1.bf16.msra.mxu0 0
        %853 = vmatprep.subr.bf16.mxu0 0
        %854 = vmatpush1.bf16.msra.mxu0 0
        %855 = vmatprep.subr.bf16.mxu0 0
        %856 = vmatpush1.bf16.msra.mxu0 0
        %857 = vmatprep.subr.bf16.mxu0 0
        %858 = vmatpush1.bf16.msra.mxu0 0
        %859 = vmatprep.subr.bf16.mxu0 0
        %860 = vmatpush1.bf16.msra.mxu0 0
        %861 = vmatprep.subr.bf16.mxu0 0
        %862 = vmatpush1.bf16.msra.mxu0 0
        %863 = vmatprep.subr.bf16.mxu0 0
        %864 = vmatpush1.bf16.msra.mxu0 0
        %865 = vmatprep.subr.bf16.mxu0 0
        %866 = vmatpush1.bf16.msra.mxu0 0
        %867 = vmatprep.mubr.bf16.mxu0 0
        %868 = vmatmul.mubr.bf16.gmra.mrb[0].mxu0 %v830
        %v869 = vpop.f32.mrb[0].mxu0
        %v870 = vadd.f32 %v654, %v869
        %v871 = vpop.f32.mrb[0].mxu0
        %v872 = vpop.f32.mrb[0].mxu0
        %v873 = vadd.f32 %v657, %v872
        %v874 = vpop.f32.mrb[0].mxu0
        %875 = vmatprep.mubr.bf16.mxu0 0
        %876 = vmatmul.mubr.bf16.gmra.mrb[0].mxu0 %v833
        %v877 = vpop.f32.mrb[0].mxu0
        %v878 = vadd.f32 %v662, %v877
        %v879 = vpop.f32.mrb[0].mxu0
        %v880 = vpop.f32.mrb[0].mxu0
        %v881 = vadd.f32 %v665, %v880
        %v882 = vpop.f32.mrb[0].mxu0
        %883 = vdwg.mxu0
        %v884 = vpack.c.bf16 %v873, %v870
        %v885 = vpack.c.bf16 %v881, %v878
        %v886 = vld [vmem:[%s3] sm:$0xf]
        %v887 = vld [vmem:[%s3 + $0x4] sm:$0xf]
        %v888 = vld [vmem:[%s3 + $0x8] sm:$0xf]
        %v889 = vld [vmem:[%s3 + $0xc] sm:$0xf]
        %v894 = vunpack.c.l.b16 %v886
        %v895 = vunpack.c.l.b16 %v887
        %v896 = vunpack.c.l.b16 %v888
        %v897 = vunpack.c.l.b16 %v889
        %v898 = vpack.c.b16 %v895, %v894
        %v899 = vpack.c.b16 %v897, %v896
        %vm902 = vcmask 261120
        %v904 = vsel %vm902, %v884, 0
        %v907 = vsel %vm902, %v885, 0
        %909 = vmatprep.subr.bf16.mxu0 0
        %910 = vmatpush1.bf16.msra.mxu0 %v898
        %911 = vmatprep.subr.bf16.mxu0 0
        %912 = vmatpush1.bf16.msra.mxu0 %v899
        %913 = vmatprep.subr.bf16.mxu0 0
        %914 = vmatpush1.bf16.msra.mxu0 0
        %915 = vmatprep.subr.bf16.mxu0 0
        %916 = vmatpush1.bf16.msra.mxu0 0
        %917 = vmatprep.subr.bf16.mxu0 0
        %918 = vmatpush1.bf16.msra.mxu0 0
        %919 = vmatprep.subr.bf16.mxu0 0
        %920 = vmatpush1.bf16.msra.mxu0 0
        %921 = vmatprep.subr.bf16.mxu0 0
        %922 = vmatpush1.bf16.msra.mxu0 0
        %923 = vmatprep.subr.bf16.mxu0 0
        %924 = vmatpush1.bf16.msra.mxu0 0
        %925 = vmatprep.subr.bf16.mxu0 0
        %926 = vmatpush1.bf16.msra.mxu0 0
        %927 = vmatprep.subr.bf16.mxu0 0
        %928 = vmatpush1.bf16.msra.mxu0 0
        %929 = vmatprep.subr.bf16.mxu0 0
        %930 = vmatpush1.bf16.msra.mxu0 0
        %931 = vmatprep.subr.bf16.mxu0 0
        %932 = vmatpush1.bf16.msra.mxu0 0
        %933 = vmatprep.subr.bf16.mxu0 0
        %934 = vmatpush1.bf16.msra.mxu0 0
        %935 = vmatprep.subr.bf16.mxu0 0
        %936 = vmatpush1.bf16.msra.mxu0 0
        %937 = vmatprep.subr.bf16.mxu0 0
        %938 = vmatpush1.bf16.msra.mxu0 0
        %939 = vmatprep.subr.bf16.mxu0 0
        %940 = vmatpush1.bf16.msra.mxu0 0
        %941 = vmatprep.mubr.bf16.mxu0 0
        %942 = vmatmul.mubr.bf16.gmra.mrb[0].mxu0 %v904
        %v943 = vpop.f32.mrb[0].mxu0
        %v944 = vadd.f32 0.0, %v943
        %v945 = vpop.f32.mrb[0].mxu0
        %v946 = vpop.f32.mrb[0].mxu0
        %v947 = vadd.f32 0.0, %v946
        %v948 = vpop.f32.mrb[0].mxu0
        %949 = vmatprep.mubr.bf16.mxu0 0
        %950 = vmatmul.mubr.bf16.gmra.mrb[0].mxu0 %v907
        %v951 = vpop.f32.mrb[0].mxu0
        %v952 = vadd.f32 0.0, %v951
        %v953 = vpop.f32.mrb[0].mxu0
        %v954 = vpop.f32.mrb[0].mxu0
        %v955 = vadd.f32 0.0, %v954
        %v956 = vpop.f32.mrb[0].mxu0
        %957 = vdwg.mxu0
        %vm958 = vcmask 1048064
        %959 = vrot.lane.b32.xlu0 %v944, 64
        %v960 = vpop.permute.xlu0 %959
        %v961 = vsel %vm958, %v960, %v944
        %962 = vrot.lane.b32.xlu0 %v947, 64
        %v963 = vpop.permute.xlu0 %962
        %v964 = vsel %vm958, %v963, %v947
        %965 = vrot.lane.b32.xlu0 %v952, 64
        %v966 = vpop.permute.xlu0 %965
        %v967 = vsel %vm958, %v966, %v952
        %968 = vrot.lane.b32.xlu0 %v955, 64
        %v969 = vpop.permute.xlu0 %968
        %v970 = vsel %vm958, %v969, %v955
        %971 = vrot.lane.b32.xlu0 %v961, 64
        %v972 = vpop.permute.xlu0 %971
        %973 = vrot.lane.b32.xlu0 %v964, 64
        %v974 = vpop.permute.xlu0 %973
        %975 = vrot.lane.b32.xlu0 %v967, 64
        %v976 = vpop.permute.xlu0 %975
        %977 = vrot.lane.b32.xlu0 %v970, 64
        %v978 = vpop.permute.xlu0 %977
        %v979 = vsel %vm958, %v972, %v944
        %v980 = vsel %vm958, %v974, %v947
        %v981 = vsel %vm958, %v976, %v952
        %v982 = vsel %vm958, %v978, %v955
        %vm983 = vcmp.lt.s32.totalorder %v300, 0
        %v984 = vsub.s32 0, %v300
        %v985 = vsel %vm983, %v984, %v300
        %v986 = vshrl.u32 %v985, 5
        %v987 = vand.u32 %v985, 31
        %v988 = vsub.s32 0, %v987
        %v989 = vsel %vm983, %v988, %v987
        %vm990 = vcmp.ne.s32.totalorder %v989, 0
        %vm991 = vcmp.lt.s32.totalorder %v989, 0
        %vm992 = vmand %vm991, %vm990
        %v993 = vadd.s32 %v989, 32
        %v994 = vsel %vm992, %v993, %v989
        %v995 = vadd.s32 %v994, 4294967295
        %vm996 = vcmp.ge.s32.totalorder %v995, 0
        %vm997 = vcmp.lt.s32.totalorder %v995, 32
        %vm998 = vmand %vm996, %vm997
        %1003 = vrot.lane.b32.xlu0 %v979, 65
        %v1004 = vpop.permute.xlu0 %1003
        %1005 = vrot.lane.b32.xlu0 %v980, 65
        %v1006 = vpop.permute.xlu0 %1005
        %1007 = vrot.lane.b32.xlu0 %v981, 65
        %v1008 = vpop.permute.xlu0 %1007
        %1009 = vrot.lane.b32.xlu0 %v982, 65
        %v1010 = vpop.permute.xlu0 %1009
        %v1015 = vsel %vm998, %v1004, 0.0
        %v1016 = vsel %vm998, %v1006, 0.0
        %v1017 = vsel %vm998, %v1008, 0.0
        %v1018 = vsel %vm998, %v1010, 0.0
        %v1019 = vadd.s32 %v994, 1
        %vm1020 = vcmp.ge.s32.totalorder %v1019, 0
        %vm1021 = vcmp.lt.s32.totalorder %v1019, 32
        %vm1022 = vmand %vm1020, %vm1021
        %1023 = vrot.lane.b32.xlu0 %v979, 127
        %v1024 = vpop.permute.xlu0 %1023
        %1025 = vrot.lane.b32.xlu0 %v980, 127
        %v1026 = vpop.permute.xlu0 %1025
        %1027 = vrot.lane.b32.xlu0 %v981, 127
        %v1028 = vpop.permute.xlu0 %1027
        %1029 = vrot.lane.b32.xlu0 %v982, 127
        %v1030 = vpop.permute.xlu0 %1029
        %v1035 = vsel %vm1022, %v1024, 0.0
        %v1036 = vsel %vm1022, %v1026, 0.0
        %v1037 = vsel %vm1022, %v1028, 0.0
        %v1038 = vsel %vm1022, %v1030, 0.0
        %s1039 = scalar_lea.vmem %s1, 48
        %v1040 = vld [vmem:[%s1039] sm:$0xf]
        %v1041 = vld [vmem:[%s1039 + $0x4] sm:$0xf]
        %v1042 = vld [vmem:[%s1039 + $0x8] sm:$0xf]
        %v1043 = vld [vmem:[%s1039 + $0xc] sm:$0xf]
        %v1044 = vpack.c.bf16 %v1016, %v1015
        %v1045 = vpack.c.bf16 %v1018, %v1017
        %v1046 = vpack.c.bf16 %v947, %v944
        %v1047 = vpack.c.bf16 %v955, %v952
        %v1048 = vpack.c.bf16 %v1036, %v1035
        %v1049 = vpack.c.bf16 %v1038, %v1037
        %v1054 = vunpack.c.l.b16 %v1040
        %v1055 = vunpack.c.l.b16 %v1041
        %v1056 = vunpack.c.l.b16 %v1042
        %v1057 = vunpack.c.l.b16 %v1043
        %v1058 = vpack.c.b16 %v1055, %v1054
        %v1059 = vpack.c.b16 %v1057, %v1056
        %v1061 = vsel %vm378, %v1058, 0
        %v1064 = vsel %vm378, %v1059, 0
        %1066 = vmatprep.subr.bf16.mxu0 0
        %1067 = vmatpush1.bf16.msra.mxu0 %v1044
        %1068 = vmatprep.subr.bf16.mxu0 0
        %1069 = vmatpush1.bf16.msra.mxu0 %v1045
        %1070 = vmatprep.subr.bf16.mxu0 0
        %1071 = vmatpush1.bf16.msra.mxu0 %v1046
        %1072 = vmatprep.subr.bf16.mxu0 0
        %1073 = vmatpush1.bf16.msra.mxu0 %v1047
        %1074 = vmatprep.subr.bf16.mxu0 0
        %1075 = vmatpush1.bf16.msra.mxu0 %v1048
        %1076 = vmatprep.subr.bf16.mxu0 0
        %1077 = vmatpush1.bf16.msra.mxu0 %v1049
        %1078 = vmatprep.subr.bf16.mxu0 0
        %1079 = vmatpush1.bf16.msra.mxu0 %v389
        %1080 = vmatprep.subr.bf16.mxu0 0
        %1081 = vmatpush1.bf16.msra.mxu0 0
        %1082 = vmatprep.subr.bf16.mxu0 0
        %1083 = vmatpush1.bf16.msra.mxu0 0
        %1084 = vmatprep.subr.bf16.mxu0 0
        %1085 = vmatpush1.bf16.msra.mxu0 0
        %1086 = vmatprep.subr.bf16.mxu0 0
        %1087 = vmatpush1.bf16.msra.mxu0 0
        %1088 = vmatprep.subr.bf16.mxu0 0
        %1089 = vmatpush1.bf16.msra.mxu0 0
        %1090 = vmatprep.subr.bf16.mxu0 0
        %1091 = vmatpush1.bf16.msra.mxu0 0
        %1092 = vmatprep.subr.bf16.mxu0 0
        %1093 = vmatpush1.bf16.msra.mxu0 0
        %1094 = vmatprep.subr.bf16.mxu0 0
        %1095 = vmatpush1.bf16.msra.mxu0 0
        %1096 = vmatprep.subr.bf16.mxu0 0
        %1097 = vmatpush1.bf16.msra.mxu0 0
        %1098 = vmatprep.mubr.bf16.mxu0 0
        %1099 = vmatmul.mubr.bf16.gmra.mrb[0].mxu0 %v1061
        %v1100 = vpop.f32.mrb[0].mxu0
        %v1101 = vadd.f32 0.0, %v1100
        %v1102 = vpop.f32.mrb[0].mxu0
        %v1103 = vpop.f32.mrb[0].mxu0
        %v1104 = vadd.f32 0.0, %v1103
        %v1105 = vpop.f32.mrb[0].mxu0
        %1106 = vmatprep.mubr.bf16.mxu0 0
        %1107 = vmatmul.mubr.bf16.gmra.mrb[0].mxu0 %v1064
        %v1108 = vpop.f32.mrb[0].mxu0
        %v1109 = vadd.f32 0.0, %v1108
        %v1110 = vpop.f32.mrb[0].mxu0
        %v1111 = vpop.f32.mrb[0].mxu0
        %v1112 = vadd.f32 0.0, %v1111
        %v1113 = vpop.f32.mrb[0].mxu0
        %1114 = vdwg.mxu0
        %v1115 = vmax.f32 %v1101, 0.0
        %v1116 = vmax.f32 %v1104, 0.0
        %v1117 = vmax.f32 %v1109, 0.0
        %v1118 = vmax.f32 %v1112, 0.0
        %1119 = vrot.lane.b32.xlu0 %v1115, 64
        %v1120 = vpop.permute.xlu0 %1119
        %v1121 = vsel %vm958, %v1120, %v1115
        %1122 = vrot.lane.b32.xlu0 %v1116, 64
        %v1123 = vpop.permute.xlu0 %1122
        %v1124 = vsel %vm958, %v1123, %v1116
        %1125 = vrot.lane.b32.xlu0 %v1117, 64
        %v1126 = vpop.permute.xlu0 %1125
        %v1127 = vsel %vm958, %v1126, %v1117
        %1128 = vrot.lane.b32.xlu0 %v1118, 64
        %v1129 = vpop.permute.xlu0 %1128
        %v1130 = vsel %vm958, %v1129, %v1118
        %1131 = vrot.lane.b32.xlu0 %v1121, 64
        %v1132 = vpop.permute.xlu0 %1131
        %1133 = vrot.lane.b32.xlu0 %v1124, 64
        %v1134 = vpop.permute.xlu0 %1133
        %1135 = vrot.lane.b32.xlu0 %v1127, 64
        %v1136 = vpop.permute.xlu0 %1135
        %1137 = vrot.lane.b32.xlu0 %v1130, 64
        %v1138 = vpop.permute.xlu0 %1137
        %v1139 = vsel %vm958, %v1132, %v1115
        %v1140 = vsel %vm958, %v1134, %v1116
        %v1141 = vsel %vm958, %v1136, %v1117
        %v1142 = vsel %vm958, %v1138, %v1118
        %v1143 = vadd.s32 %v994, 4294967293
        %vm1144 = vcmp.ge.s32.totalorder %v1143, 0
        %vm1145 = vcmp.lt.s32.totalorder %v1143, 32
        %vm1146 = vmand %vm1144, %vm1145
        %1151 = vrot.lane.b32.xlu0 %v1139, 67
        %v1152 = vpop.permute.xlu0 %1151
        %1153 = vrot.lane.b32.xlu0 %v1140, 67
        %v1154 = vpop.permute.xlu0 %1153
        %1155 = vrot.lane.b32.xlu0 %v1141, 67
        %v1156 = vpop.permute.xlu0 %1155
        %1157 = vrot.lane.b32.xlu0 %v1142, 67
        %v1158 = vpop.permute.xlu0 %1157
        %v1163 = vsel %vm1146, %v1152, 0.0
        %v1164 = vsel %vm1146, %v1154, 0.0
        %v1165 = vsel %vm1146, %v1156, 0.0
        %v1166 = vsel %vm1146, %v1158, 0.0
        %v1167 = vadd.s32 %v994, 3
        %vm1168 = vcmp.ge.s32.totalorder %v1167, 0
        %vm1169 = vcmp.lt.s32.totalorder %v1167, 32
        %vm1170 = vmand %vm1168, %vm1169
        %1171 = vrot.lane.b32.xlu0 %v1139, 125
        %v1172 = vpop.permute.xlu0 %1171
        %1173 = vrot.lane.b32.xlu0 %v1140, 125
        %v1174 = vpop.permute.xlu0 %1173
        %1175 = vrot.lane.b32.xlu0 %v1141, 125
        %v1176 = vpop.permute.xlu0 %1175
        %1177 = vrot.lane.b32.xlu0 %v1142, 125
        %v1178 = vpop.permute.xlu0 %1177
        %v1183 = vsel %vm1170, %v1172, 0.0
        %v1184 = vsel %vm1170, %v1174, 0.0
        %v1185 = vsel %vm1170, %v1176, 0.0
        %v1186 = vsel %vm1170, %v1178, 0.0
        %s1187 = scalar_lea.vmem %s1, 64
        %v1188 = vld [vmem:[%s1187] sm:$0xf]
        %v1189 = vld [vmem:[%s1187 + $0x4] sm:$0xf]
        %v1190 = vld [vmem:[%s1187 + $0x8] sm:$0xf]
        %v1191 = vld [vmem:[%s1187 + $0xc] sm:$0xf]
        %v1192 = vpack.c.bf16 %v1164, %v1163
        %v1193 = vpack.c.bf16 %v1166, %v1165
        %v1194 = vpack.c.bf16 %v1116, %v1115
        %v1195 = vpack.c.bf16 %v1118, %v1117
        %v1196 = vpack.c.bf16 %v1184, %v1183
        %v1197 = vpack.c.bf16 %v1186, %v1185
        %v1202 = vunpack.c.l.b16 %v1188
        %v1203 = vunpack.c.l.b16 %v1189
        %v1204 = vunpack.c.l.b16 %v1190
        %v1205 = vunpack.c.l.b16 %v1191
        %v1206 = vpack.c.b16 %v1203, %v1202
        %v1207 = vpack.c.b16 %v1205, %v1204
        %v1209 = vsel %vm378, %v1206, 0
        %v1212 = vsel %vm378, %v1207, 0
        %1214 = vmatprep.subr.bf16.mxu0 0
        %1215 = vmatpush1.bf16.msra.mxu0 %v1192
        %1216 = vmatprep.subr.bf16.mxu0 0
        %1217 = vmatpush1.bf16.msra.mxu0 %v1193
        %1218 = vmatprep.subr.bf16.mxu0 0
        %1219 = vmatpush1.bf16.msra.mxu0 %v1194
        %1220 = vmatprep.subr.bf16.mxu0 0
        %1221 = vmatpush1.bf16.msra.mxu0 %v1195
        %1222 = vmatprep.subr.bf16.mxu0 0
        %1223 = vmatpush1.bf16.msra.mxu0 %v1196
        %1224 = vmatprep.subr.bf16.mxu0 0
        %1225 = vmatpush1.bf16.msra.mxu0 %v1197
        %1226 = vmatprep.subr.bf16.mxu0 0
        %1227 = vmatpush1.bf16.msra.mxu0 %v389
        %1228 = vmatprep.subr.bf16.mxu0 0
        %1229 = vmatpush1.bf16.msra.mxu0 0
        %1230 = vmatprep.subr.bf16.mxu0 0
        %1231 = vmatpush1.bf16.msra.mxu0 0
        %1232 = vmatprep.subr.bf16.mxu0 0
        %1233 = vmatpush1.bf16.msra.mxu0 0
        %1234 = vmatprep.subr.bf16.mxu0 0
        %1235 = vmatpush1.bf16.msra.mxu0 0
        %1236 = vmatprep.subr.bf16.mxu0 0
        %1237 = vmatpush1.bf16.msra.mxu0 0
        %1238 = vmatprep.subr.bf16.mxu0 0
        %1239 = vmatpush1.bf16.msra.mxu0 0
        %1240 = vmatprep.subr.bf16.mxu0 0
        %1241 = vmatpush1.bf16.msra.mxu0 0
        %1242 = vmatprep.subr.bf16.mxu0 0
        %1243 = vmatpush1.bf16.msra.mxu0 0
        %1244 = vmatprep.subr.bf16.mxu0 0
        %1245 = vmatpush1.bf16.msra.mxu0 0
        %1246 = vmatprep.mubr.bf16.mxu0 0
        %1247 = vmatmul.mubr.bf16.gmra.mrb[0].mxu0 %v1209
        %v1248 = vpop.f32.mrb[0].mxu0
        %v1249 = vadd.f32 0.0, %v1248
        %v1250 = vpop.f32.mrb[0].mxu0
        %v1251 = vpop.f32.mrb[0].mxu0
        %v1252 = vadd.f32 0.0, %v1251
        %v1253 = vpop.f32.mrb[0].mxu0
        %1254 = vmatprep.mubr.bf16.mxu0 0
        %1255 = vmatmul.mubr.bf16.gmra.mrb[0].mxu0 %v1212
        %v1256 = vpop.f32.mrb[0].mxu0
        %v1257 = vadd.f32 0.0, %v1256
        %v1258 = vpop.f32.mrb[0].mxu0
        %v1259 = vpop.f32.mrb[0].mxu0
        %v1260 = vadd.f32 0.0, %v1259
        %v1261 = vpop.f32.mrb[0].mxu0
        %1262 = vdwg.mxu0
        %v1263 = vmax.f32 %v1249, 0.0
        %v1264 = vmax.f32 %v1252, 0.0
        %v1265 = vmax.f32 %v1257, 0.0
        %v1266 = vmax.f32 %v1260, 0.0
        %s1267 = scalar_lea.vmem [#allocation2], 32
        %v1268 = vld [vmem:[%s1267] sm:$0xf]
        %v1269 = vld [vmem:[%s1267 + $0x4] sm:$0xf]
        %v1270 = vld [vmem:[%s1267 + $0x8] sm:$0xf]
        %v1271 = vld [vmem:[%s1267 + $0xc] sm:$0xf]
        %v1272 = vpack.c.bf16 %v1264, %v1263
        %v1273 = vpack.c.bf16 %v1266, %v1265
        %v1278 = vunpack.c.l.b16 %v1268
        %v1279 = vunpack.c.l.b16 %v1269
        %v1280 = vunpack.c.l.b16 %v1270
        %v1281 = vunpack.c.l.b16 %v1271
        %v1282 = vpack.c.b16 %v1279, %v1278
        %v1283 = vpack.c.b16 %v1281, %v1280
        %v1285 = vsel %vm612, %v1282, 0
        %v1288 = vsel %vm612, %v1283, 0
        %1290 = vmatprep.subr.bf16.mxu0 0
        %1291 = vmatpush1.bf16.msra.mxu0 %v1272
        %1292 = vmatprep.subr.bf16.mxu0 0
        %1293 = vmatpush1.bf16.msra.mxu0 %v1273
        %1294 = vmatprep.subr.bf16.mxu0 0
        %1295 = vmatpush1.bf16.msra.mxu0 %v389
        %1296 = vmatprep.subr.bf16.mxu0 0
        %1297 = vmatpush1.bf16.msra.mxu0 0
        %1298 = vmatprep.subr.bf16.mxu0 0
        %1299 = vmatpush1.bf16.msra.mxu0 0
        %1300 = vmatprep.subr.bf16.mxu0 0
        %1301 = vmatpush1.bf16.msra.mxu0 0
        %1302 = vmatprep.subr.bf16.mxu0 0
        %1303 = vmatpush1.bf16.msra.mxu0 0
        %1304 = vmatprep.subr.bf16.mxu0 0
        %1305 = vmatpush1.bf16.msra.mxu0 0
        %1306 = vmatprep.subr.bf16.mxu0 0
        %1307 = vmatpush1.bf16.msra.mxu0 0
        %1308 = vmatprep.subr.bf16.mxu0 0
        %1309 = vmatpush1.bf16.msra.mxu0 0
        %1310 = vmatprep.subr.bf16.mxu0 0
        %1311 = vmatpush1.bf16.msra.mxu0 0
        %1312 = vmatprep.subr.bf16.mxu0 0
        %1313 = vmatpush1.bf16.msra.mxu0 0
        %1314 = vmatprep.subr.bf16.mxu0 0
        %1315 = vmatpush1.bf16.msra.mxu0 0
        %1316 = vmatprep.subr.bf16.mxu0 0
        %1317 = vmatpush1.bf16.msra.mxu0 0
        %1318 = vmatprep.subr.bf16.mxu0 0
        %1319 = vmatpush1.bf16.msra.mxu0 0
        %1320 = vmatprep.subr.bf16.mxu0 0
        %1321 = vmatpush1.bf16.msra.mxu0 0
        %1322 = vmatprep.mubr.bf16.mxu0 0
        %1323 = vmatmul.mubr.bf16.gmra.mrb[0].mxu0 %v1285
        %v1324 = vpop.f32.mrb[0].mxu0
        %v1325 = vadd.f32 %v1101, %v1324
        %v1326 = vpop.f32.mrb[0].mxu0
        %v1327 = vpop.f32.mrb[0].mxu0
        %v1328 = vadd.f32 %v1104, %v1327
        %v1329 = vpop.f32.mrb[0].mxu0
        %1330 = vmatprep.mubr.bf16.mxu0 0
        %1331 = vmatmul.mubr.bf16.gmra.mrb[0].mxu0 %v1288
        %v1332 = vpop.f32.mrb[0].mxu0
        %v1333 = vadd.f32 %v1109, %v1332
        %v1334 = vpop.f32.mrb[0].mxu0
        %v1335 = vpop.f32.mrb[0].mxu0
        %v1336 = vadd.f32 %v1112, %v1335
        %v1337 = vpop.f32.mrb[0].mxu0
        %1338 = vdwg.mxu0
        %v1339 = vmax.f32 %v1325, 0.0
        %v1340 = vmax.f32 %v1328, 0.0
        %v1341 = vmax.f32 %v1333, 0.0
        %v1342 = vmax.f32 %v1336, 0.0
        %1343 = vrot.lane.b32.xlu0 %v1339, 64
        %v1344 = vpop.permute.xlu0 %1343
        %v1345 = vsel %vm958, %v1344, %v1339
        %1346 = vrot.lane.b32.xlu0 %v1340, 64
        %v1347 = vpop.permute.xlu0 %1346
        %v1348 = vsel %vm958, %v1347, %v1340
        %1349 = vrot.lane.b32.xlu0 %v1341, 64
        %v1350 = vpop.permute.xlu0 %1349
        %v1351 = vsel %vm958, %v1350, %v1341
        %1352 = vrot.lane.b32.xlu0 %v1342, 64
        %v1353 = vpop.permute.xlu0 %1352
        %v1354 = vsel %vm958, %v1353, %v1342
        %1355 = vrot.lane.b32.xlu0 %v1345, 64
        %v1356 = vpop.permute.xlu0 %1355
        %1357 = vrot.lane.b32.xlu0 %v1348, 64
        %v1358 = vpop.permute.xlu0 %1357
        %1359 = vrot.lane.b32.xlu0 %v1351, 64
        %v1360 = vpop.permute.xlu0 %1359
        %1361 = vrot.lane.b32.xlu0 %v1354, 64
        %v1362 = vpop.permute.xlu0 %1361
        %v1363 = vsel %vm958, %v1356, %v1339
        %v1364 = vsel %vm958, %v1358, %v1340
        %v1365 = vsel %vm958, %v1360, %v1341
        %v1366 = vsel %vm958, %v1362, %v1342
        %1371 = vrot.lane.b32.xlu0 %v1363, 65
        %v1372 = vpop.permute.xlu0 %1371
        %1373 = vrot.lane.b32.xlu0 %v1364, 65
        %v1374 = vpop.permute.xlu0 %1373
        %1375 = vrot.lane.b32.xlu0 %v1365, 65
        %v1376 = vpop.permute.xlu0 %1375
        %1377 = vrot.lane.b32.xlu0 %v1366, 65
        %v1378 = vpop.permute.xlu0 %1377
        %v1383 = vsel %vm998, %v1372, 0.0
        %v1384 = vsel %vm998, %v1374, 0.0
        %v1385 = vsel %vm998, %v1376, 0.0
        %v1386 = vsel %vm998, %v1378, 0.0
        %1387 = vrot.lane.b32.xlu0 %v1363, 127
        %v1388 = vpop.permute.xlu0 %1387
        %1389 = vrot.lane.b32.xlu0 %v1364, 127
        %v1390 = vpop.permute.xlu0 %1389
        %1391 = vrot.lane.b32.xlu0 %v1365, 127
        %v1392 = vpop.permute.xlu0 %1391
        %1393 = vrot.lane.b32.xlu0 %v1366, 127
        %v1394 = vpop.permute.xlu0 %1393
        %v1399 = vsel %vm1022, %v1388, 0.0
        %v1400 = vsel %vm1022, %v1390, 0.0
        %v1401 = vsel %vm1022, %v1392, 0.0
        %v1402 = vsel %vm1022, %v1394, 0.0
        %s1403 = scalar_lea.vmem %s1, 80
        %v1404 = vld [vmem:[%s1403] sm:$0xf]
        %v1405 = vld [vmem:[%s1403 + $0x4] sm:$0xf]
        %v1406 = vld [vmem:[%s1403 + $0x8] sm:$0xf]
        %v1407 = vld [vmem:[%s1403 + $0xc] sm:$0xf]
        %v1408 = vpack.c.bf16 %v1384, %v1383
        %v1409 = vpack.c.bf16 %v1386, %v1385
        %v1410 = vpack.c.bf16 %v1340, %v1339
        %v1411 = vpack.c.bf16 %v1342, %v1341
        %v1412 = vpack.c.bf16 %v1400, %v1399
        %v1413 = vpack.c.bf16 %v1402, %v1401
        %v1418 = vunpack.c.l.b16 %v1404
        %v1419 = vunpack.c.l.b16 %v1405
        %v1420 = vunpack.c.l.b16 %v1406
        %v1421 = vunpack.c.l.b16 %v1407
        %v1422 = vpack.c.b16 %v1419, %v1418
        %v1423 = vpack.c.b16 %v1421, %v1420
        %v1425 = vsel %vm378, %v1422, 0
        %v1428 = vsel %vm378, %v1423, 0
        %1430 = vmatprep.subr.bf16.mxu0 0
        %1431 = vmatpush1.bf16.msra.mxu0 %v1408
        %1432 = vmatprep.subr.bf16.mxu0 0
        %1433 = vmatpush1.bf16.msra.mxu0 %v1409
        %1434 = vmatprep.subr.bf16.mxu0 0
        %1435 = vmatpush1.bf16.msra.mxu0 %v1410
        %1436 = vmatprep.subr.bf16.mxu0 0
        %1437 = vmatpush1.bf16.msra.mxu0 %v1411
        %1438 = vmatprep.subr.bf16.mxu0 0
        %1439 = vmatpush1.bf16.msra.mxu0 %v1412
        %1440 = vmatprep.subr.bf16.mxu0 0
        %1441 = vmatpush1.bf16.msra.mxu0 %v1413
        %1442 = vmatprep.subr.bf16.mxu0 0
        %1443 = vmatpush1.bf16.msra.mxu0 %v389
        %1444 = vmatprep.subr.bf16.mxu0 0
        %1445 = vmatpush1.bf16.msra.mxu0 0
        %1446 = vmatprep.subr.bf16.mxu0 0
        %1447 = vmatpush1.bf16.msra.mxu0 0
        %1448 = vmatprep.subr.bf16.mxu0 0
        %1449 = vmatpush1.bf16.msra.mxu0 0
        %1450 = vmatprep.subr.bf16.mxu0 0
        %1451 = vmatpush1.bf16.msra.mxu0 0
        %1452 = vmatprep.subr.bf16.mxu0 0
        %1453 = vmatpush1.bf16.msra.mxu0 0
        %1454 = vmatprep.subr.bf16.mxu0 0
        %1455 = vmatpush1.bf16.msra.mxu0 0
        %1456 = vmatprep.subr.bf16.mxu0 0
        %1457 = vmatpush1.bf16.msra.mxu0 0
        %1458 = vmatprep.subr.bf16.mxu0 0
        %1459 = vmatpush1.bf16.msra.mxu0 0
        %1460 = vmatprep.subr.bf16.mxu0 0
        %1461 = vmatpush1.bf16.msra.mxu0 0
        %1462 = vmatprep.mubr.bf16.mxu0 0
        %1463 = vmatmul.mubr.bf16.gmra.mrb[0].mxu0 %v1425
        %v1464 = vpop.f32.mrb[0].mxu0
        %v1465 = vadd.f32 0.0, %v1464
        %v1466 = vpop.f32.mrb[0].mxu0
        %v1467 = vpop.f32.mrb[0].mxu0
        %v1468 = vadd.f32 0.0, %v1467
        %v1469 = vpop.f32.mrb[0].mxu0
        %1470 = vmatprep.mubr.bf16.mxu0 0
        %1471 = vmatmul.mubr.bf16.gmra.mrb[0].mxu0 %v1428
        %v1472 = vpop.f32.mrb[0].mxu0
        %v1473 = vadd.f32 0.0, %v1472
        %v1474 = vpop.f32.mrb[0].mxu0
        %v1475 = vpop.f32.mrb[0].mxu0
        %v1476 = vadd.f32 0.0, %v1475
        %v1477 = vpop.f32.mrb[0].mxu0
        %1478 = vdwg.mxu0
        %v1479 = vmax.f32 %v1465, 0.0
        %v1480 = vmax.f32 %v1468, 0.0
        %v1481 = vmax.f32 %v1473, 0.0
        %v1482 = vmax.f32 %v1476, 0.0
        %s1483 = scalar_lea.vmem [#allocation2], 48
        %v1484 = vld [vmem:[%s1483] sm:$0xf]
        %v1485 = vld [vmem:[%s1483 + $0x4] sm:$0xf]
        %v1486 = vld [vmem:[%s1483 + $0x8] sm:$0xf]
        %v1487 = vld [vmem:[%s1483 + $0xc] sm:$0xf]
        %v1488 = vpack.c.bf16 %v1480, %v1479
        %v1489 = vpack.c.bf16 %v1482, %v1481
        %v1494 = vunpack.c.l.b16 %v1484
        %v1495 = vunpack.c.l.b16 %v1485
        %v1496 = vunpack.c.l.b16 %v1486
        %v1497 = vunpack.c.l.b16 %v1487
        %v1498 = vpack.c.b16 %v1495, %v1494
        %v1499 = vpack.c.b16 %v1497, %v1496
        %v1501 = vsel %vm612, %v1498, 0
        %v1504 = vsel %vm612, %v1499, 0
        %1506 = vmatprep.subr.bf16.mxu0 0
        %1507 = vmatpush1.bf16.msra.mxu0 %v1488
        %1508 = vmatprep.subr.bf16.mxu0 0
        %1509 = vmatpush1.bf16.msra.mxu0 %v1489
        %1510 = vmatprep.subr.bf16.mxu0 0
        %1511 = vmatpush1.bf16.msra.mxu0 %v389
        %1512 = vmatprep.subr.bf16.mxu0 0
        %1513 = vmatpush1.bf16.msra.mxu0 0
        %1514 = vmatprep.subr.bf16.mxu0 0
        %1515 = vmatpush1.bf16.msra.mxu0 0
        %1516 = vmatprep.subr.bf16.mxu0 0
        %1517 = vmatpush1.bf16.msra.mxu0 0
        %1518 = vmatprep.subr.bf16.mxu0 0
        %1519 = vmatpush1.bf16.msra.mxu0 0
        %1520 = vmatprep.subr.bf16.mxu0 0
        %1521 = vmatpush1.bf16.msra.mxu0 0
        %1522 = vmatprep.subr.bf16.mxu0 0
        %1523 = vmatpush1.bf16.msra.mxu0 0
        %1524 = vmatprep.subr.bf16.mxu0 0
        %1525 = vmatpush1.bf16.msra.mxu0 0
        %1526 = vmatprep.subr.bf16.mxu0 0
        %1527 = vmatpush1.bf16.msra.mxu0 0
        %1528 = vmatprep.subr.bf16.mxu0 0
        %1529 = vmatpush1.bf16.msra.mxu0 0
        %1530 = vmatprep.subr.bf16.mxu0 0
        %1531 = vmatpush1.bf16.msra.mxu0 0
        %1532 = vmatprep.subr.bf16.mxu0 0
        %1533 = vmatpush1.bf16.msra.mxu0 0
        %1534 = vmatprep.subr.bf16.mxu0 0
        %1535 = vmatpush1.bf16.msra.mxu0 0
        %1536 = vmatprep.subr.bf16.mxu0 0
        %1537 = vmatpush1.bf16.msra.mxu0 0
        %1538 = vmatprep.mubr.bf16.mxu0 0
        %1539 = vmatmul.mubr.bf16.gmra.mrb[0].mxu0 %v1501
        %v1540 = vpop.f32.mrb[0].mxu0
        %v1541 = vadd.f32 %v1325, %v1540
        %v1542 = vpop.f32.mrb[0].mxu0
        %v1543 = vpop.f32.mrb[0].mxu0
        %v1544 = vadd.f32 %v1328, %v1543
        %v1545 = vpop.f32.mrb[0].mxu0
        %1546 = vmatprep.mubr.bf16.mxu0 0
        %1547 = vmatmul.mubr.bf16.gmra.mrb[0].mxu0 %v1504
        %v1548 = vpop.f32.mrb[0].mxu0
        %v1549 = vadd.f32 %v1333, %v1548
        %v1550 = vpop.f32.mrb[0].mxu0
        %v1551 = vpop.f32.mrb[0].mxu0
        %v1552 = vadd.f32 %v1336, %v1551
        %v1553 = vpop.f32.mrb[0].mxu0
        %1554 = vdwg.mxu0
        %v1555 = vpack.c.bf16 %v1544, %v1541
        %v1556 = vpack.c.bf16 %v1552, %v1549
        %v1557 = vld [vmem:[%s4] sm:$0xf]
        %v1558 = vld [vmem:[%s4 + $0x4] sm:$0xf]
        %v1559 = vld [vmem:[%s4 + $0x8] sm:$0xf]
        %v1560 = vld [vmem:[%s4 + $0xc] sm:$0xf]
        %v1561 = vld [vmem:[%s4 + $0x10] sm:$0xf]
        %v1562 = vld [vmem:[%s4 + $0x14] sm:$0xf]
        %v1563 = vld [vmem:[%s4 + $0x18] sm:$0xf]
        %v1564 = vld [vmem:[%s4 + $0x1c] sm:$0xf]
        %v1573 = vunpack.c.l.b16 %v1557
        %v1574 = vunpack.c.l.b16 %v1558
        %v1575 = vunpack.c.l.b16 %v1559
        %v1576 = vunpack.c.l.b16 %v1560
        %v1577 = vunpack.c.l.b16 %v1561
        %v1578 = vunpack.c.l.b16 %v1562
        %v1579 = vunpack.c.l.b16 %v1563
        %v1580 = vunpack.c.l.b16 %v1564
        %v1581 = vpack.c.b16 %v1574, %v1573
        %v1582 = vpack.c.b16 %v1576, %v1575
        %v1583 = vpack.c.b16 %v1578, %v1577
        %v1584 = vpack.c.b16 %v1580, %v1579
        %vm1589 = vcmask 523264
        %v1591 = vsel %vm1589, %v1555, 0
        %v1594 = vsel %vm1589, %v1556, 0
        %1596 = vmatprep.subr.bf16.mxu0 0
        %1597 = vmatpush1.bf16.msra.mxu0 %v1581
        %1598 = vmatprep.subr.bf16.mxu0 0
        %1599 = vmatpush1.bf16.msra.mxu0 %v1582
        %1600 = vmatprep.subr.bf16.mxu0 0
        %1601 = vmatpush1.bf16.msra.mxu0 %v1583
        %1602 = vmatprep.subr.bf16.mxu0 0
        %1603 = vmatpush1.bf16.msra.mxu0 %v1584
        %1604 = vmatprep.subr.bf16.mxu0 0
        %1605 = vmatpush1.bf16.msra.mxu0 0
        %1606 = vmatprep.subr.bf16.mxu0 0
        %1607 = vmatpush1.bf16.msra.mxu0 0
        %1608 = vmatprep.subr.bf16.mxu0 0
        %1609 = vmatpush1.bf16.msra.mxu0 0
        %1610 = vmatprep.subr.bf16.mxu0 0
        %1611 = vmatpush1.bf16.msra.mxu0 0
        %1612 = vmatprep.subr.bf16.mxu0 0
        %1613 = vmatpush1.bf16.msra.mxu0 0
        %1614 = vmatprep.subr.bf16.mxu0 0
        %1615 = vmatpush1.bf16.msra.mxu0 0
        %1616 = vmatprep.subr.bf16.mxu0 0
        %1617 = vmatpush1.bf16.msra.mxu0 0
        %1618 = vmatprep.subr.bf16.mxu0 0
        %1619 = vmatpush1.bf16.msra.mxu0 0
        %1620 = vmatprep.subr.bf16.mxu0 0
        %1621 = vmatpush1.bf16.msra.mxu0 0
        %1622 = vmatprep.subr.bf16.mxu0 0
        %1623 = vmatpush1.bf16.msra.mxu0 0
        %1624 = vmatprep.subr.bf16.mxu0 0
        %1625 = vmatpush1.bf16.msra.mxu0 0
        %1626 = vmatprep.subr.bf16.mxu0 0
        %1627 = vmatpush1.bf16.msra.mxu0 0
        %1628 = vmatprep.mubr.bf16.mxu0 0
        %1629 = vmatmul.mubr.bf16.gmra.mrb[0].mxu0 %v1591
        %v1630 = vpop.f32.mrb[0].mxu0
        %v1631 = vadd.f32 0.0, %v1630
        %v1632 = vpop.f32.mrb[0].mxu0
        %v1633 = vpop.f32.mrb[0].mxu0
        %v1634 = vadd.f32 0.0, %v1633
        %v1635 = vpop.f32.mrb[0].mxu0
        %1636 = vmatprep.mubr.bf16.mxu0 0
        %1637 = vmatmul.mubr.bf16.gmra.mrb[0].mxu0 %v1594
        %v1638 = vpop.f32.mrb[0].mxu0
        %v1639 = vadd.f32 0.0, %v1638
        %v1640 = vpop.f32.mrb[0].mxu0
        %v1641 = vpop.f32.mrb[0].mxu0
        %v1642 = vadd.f32 0.0, %v1641
        %v1643 = vpop.f32.mrb[0].mxu0
        %1644 = vdwg.mxu0
        %1645 = vrot.lane.b32.xlu0 %v1631, 1
        %v1646 = vpop.permute.xlu0 %1645
        %1647 = vrot.lane.b32.xlu0 %v1634, 1
        %v1648 = vpop.permute.xlu0 %1647
        %1649 = vrot.lane.b32.xlu0 %v1639, 1
        %v1650 = vpop.permute.xlu0 %1649
        %1651 = vrot.lane.b32.xlu0 %v1642, 1
        %v1652 = vpop.permute.xlu0 %1651
        %vm1653 = vcmp.lt.s32.totalorder %v300, 0
        %v1654 = vsub.s32 0, %v300
        %v1655 = vsel %vm1653, %v1654, %v300
        %v1656 = vshrl.u32 %v1655, 6
        %v1657 = vand.u32 %v1655, 63
        %v1658 = vsub.s32 0, %v1657
        %v1659 = vsel %vm1653, %v1658, %v1657
        %vm1660 = vcmp.ne.s32.totalorder %v1659, 0
        %vm1661 = vcmp.lt.s32.totalorder %v1659, 0
        %vm1662 = vmand %vm1661, %vm1660
        %v1663 = vadd.s32 %v1659, 64
        %v1664 = vsel %vm1662, %v1663, %v1659
        %v1665 = vadd.s32 %v1664, 4294967295
        %vm1666 = vcmp.ge.s32.totalorder %v1665, 0
        %vm1667 = vcmp.lt.s32.totalorder %v1665, 64
        %vm1668 = vmand %vm1666, %vm1667
        %v1669 = vsel %vm1668, %v1646, 0.0
        %v1670 = vsel %vm1668, %v1648, 0.0
        %v1671 = vsel %vm1668, %v1650, 0.0
        %v1672 = vsel %vm1668, %v1652, 0.0
        %1673 = vrot.lane.b32.xlu0 %v1631, 127
        %v1674 = vpop.permute.xlu0 %1673
        %1675 = vrot.lane.b32.xlu0 %v1634, 127
        %v1676 = vpop.permute.xlu0 %1675
        %1677 = vrot.lane.b32.xlu0 %v1639, 127
        %v1678 = vpop.permute.xlu0 %1677
        %1679 = vrot.lane.b32.xlu0 %v1642, 127
        %v1680 = vpop.permute.xlu0 %1679
        %v1681 = vadd.s32 %v1664, 1
        %vm1682 = vcmp.ge.s32.totalorder %v1681, 0
        %vm1683 = vcmp.lt.s32.totalorder %v1681, 64
        %vm1684 = vmand %vm1682, %vm1683
        %v1685 = vsel %vm1684, %v1674, 0.0
        %v1686 = vsel %vm1684, %v1676, 0.0
        %v1687 = vsel %vm1684, %v1678, 0.0
        %v1688 = vsel %vm1684, %v1680, 0.0
        %s1689 = scalar_lea.vmem %s1, 96
        %v1690 = vld [vmem:[%s1689] sm:$0xf]
        %v1691 = vld [vmem:[%s1689 + $0x4] sm:$0xf]
        %v1692 = vld [vmem:[%s1689 + $0x8] sm:$0xf]
        %v1693 = vld [vmem:[%s1689 + $0xc] sm:$0xf]
        %v1694 = vpack.c.bf16 %v1670, %v1669
        %v1695 = vpack.c.bf16 %v1672, %v1671
        %v1696 = vpack.c.bf16 %v1634, %v1631
        %v1697 = vpack.c.bf16 %v1642, %v1639
        %v1698 = vpack.c.bf16 %v1686, %v1685
        %v1699 = vpack.c.bf16 %v1688, %v1687
        %v1704 = vunpack.c.l.b16 %v1690
        %v1705 = vunpack.c.l.b16 %v1691
        %v1706 = vunpack.c.l.b16 %v1692
        %v1707 = vunpack.c.l.b16 %v1693
        %v1708 = vpack.c.b16 %v1705, %v1704
        %v1709 = vpack.c.b16 %v1707, %v1706
        %v1711 = vsel %vm378, %v1708, 0
        %v1714 = vsel %vm378, %v1709, 0
        %1716 = vmatprep.subr.bf16.mxu0 0
        %1717 = vmatpush1.bf16.msra.mxu0 %v1694
        %1718 = vmatprep.subr.bf16.mxu0 0
        %1719 = vmatpush1.bf16.msra.mxu0 %v1695
        %1720 = vmatprep.subr.bf16.mxu0 0
        %1721 = vmatpush1.bf16.msra.mxu0 %v1696
        %1722 = vmatprep.subr.bf16.mxu0 0
        %1723 = vmatpush1.bf16.msra.mxu0 %v1697
        %1724 = vmatprep.subr.bf16.mxu0 0
        %1725 = vmatpush1.bf16.msra.mxu0 %v1698
        %1726 = vmatprep.subr.bf16.mxu0 0
        %1727 = vmatpush1.bf16.msra.mxu0 %v1699
        %1728 = vmatprep.subr.bf16.mxu0 0
        %1729 = vmatpush1.bf16.msra.mxu0 %v389
        %1730 = vmatprep.subr.bf16.mxu0 0
        %1731 = vmatpush1.bf16.msra.mxu0 0
        %1732 = vmatprep.subr.bf16.mxu0 0
        %1733 = vmatpush1.bf16.msra.mxu0 0
        %1734 = vmatprep.subr.bf16.mxu0 0
        %1735 = vmatpush1.bf16.msra.mxu0 0
        %1736 = vmatprep.subr.bf16.mxu0 0
        %1737 = vmatpush1.bf16.msra.mxu0 0
        %1738 = vmatprep.subr.bf16.mxu0 0
        %1739 = vmatpush1.bf16.msra.mxu0 0
        %1740 = vmatprep.subr.bf16.mxu0 0
        %1741 = vmatpush1.bf16.msra.mxu0 0
        %1742 = vmatprep.subr.bf16.mxu0 0
        %1743 = vmatpush1.bf16.msra.mxu0 0
        %1744 = vmatprep.subr.bf16.mxu0 0
        %1745 = vmatpush1.bf16.msra.mxu0 0
        %1746 = vmatprep.subr.bf16.mxu0 0
        %1747 = vmatpush1.bf16.msra.mxu0 0
        %1748 = vmatprep.mubr.bf16.mxu0 0
        %1749 = vmatmul.mubr.bf16.gmra.mrb[0].mxu0 %v1711
        %v1750 = vpop.f32.mrb[0].mxu0
        %v1751 = vadd.f32 0.0, %v1750
        %v1752 = vpop.f32.mrb[0].mxu0
        %v1753 = vpop.f32.mrb[0].mxu0
        %v1754 = vadd.f32 0.0, %v1753
        %v1755 = vpop.f32.mrb[0].mxu0
        %1756 = vmatprep.mubr.bf16.mxu0 0
        %1757 = vmatmul.mubr.bf16.gmra.mrb[0].mxu0 %v1714
        %v1758 = vpop.f32.mrb[0].mxu0
        %v1759 = vadd.f32 0.0, %v1758
        %v1760 = vpop.f32.mrb[0].mxu0
        %v1761 = vpop.f32.mrb[0].mxu0
        %v1762 = vadd.f32 0.0, %v1761
        %v1763 = vpop.f32.mrb[0].mxu0
        %1764 = vdwg.mxu0
        %1765 = vrot.lane.b32.xlu0 %v1751, 1
        %v1766 = vpop.permute.xlu0 %1765
        %1767 = vrot.lane.b32.xlu0 %v1754, 1
        %v1768 = vpop.permute.xlu0 %1767
        %1769 = vrot.lane.b32.xlu0 %v1759, 1
        %v1770 = vpop.permute.xlu0 %1769
        %1771 = vrot.lane.b32.xlu0 %v1762, 1
        %v1772 = vpop.permute.xlu0 %1771
        %v1773 = vsel %vm1668, %v1766, 0.0
        %v1774 = vsel %vm1668, %v1768, 0.0
        %v1775 = vsel %vm1668, %v1770, 0.0
        %v1776 = vsel %vm1668, %v1772, 0.0
        %1777 = vrot.lane.b32.xlu0 %v1751, 127
        %v1778 = vpop.permute.xlu0 %1777
        %1779 = vrot.lane.b32.xlu0 %v1754, 127
        %v1780 = vpop.permute.xlu0 %1779
        %1781 = vrot.lane.b32.xlu0 %v1759, 127
        %v1782 = vpop.permute.xlu0 %1781
        %1783 = vrot.lane.b32.xlu0 %v1762, 127
        %v1784 = vpop.permute.xlu0 %1783
        %v1785 = vsel %vm1684, %v1778, 0.0
        %v1786 = vsel %vm1684, %v1780, 0.0
        %v1787 = vsel %vm1684, %v1782, 0.0
        %v1788 = vsel %vm1684, %v1784, 0.0
        %s1789 = scalar_lea.vmem %s1, 112
        %v1790 = vld [vmem:[%s1789] sm:$0xf]
        %v1791 = vld [vmem:[%s1789 + $0x4] sm:$0xf]
        %v1792 = vld [vmem:[%s1789 + $0x8] sm:$0xf]
        %v1793 = vld [vmem:[%s1789 + $0xc] sm:$0xf]
        %v1794 = vpack.c.bf16 %v1774, %v1773
        %v1795 = vpack.c.bf16 %v1776, %v1775
        %v1796 = vpack.c.bf16 %v1754, %v1751
        %v1797 = vpack.c.bf16 %v1762, %v1759
        %v1798 = vpack.c.bf16 %v1786, %v1785
        %v1799 = vpack.c.bf16 %v1788, %v1787
        %v1804 = vunpack.c.l.b16 %v1790
        %v1805 = vunpack.c.l.b16 %v1791
        %v1806 = vunpack.c.l.b16 %v1792
        %v1807 = vunpack.c.l.b16 %v1793
        %v1808 = vpack.c.b16 %v1805, %v1804
        %v1809 = vpack.c.b16 %v1807, %v1806
        %v1811 = vsel %vm378, %v1808, 0
        %v1814 = vsel %vm378, %v1809, 0
        %1816 = vmatprep.subr.bf16.mxu0 0
        %1817 = vmatpush1.bf16.msra.mxu0 %v1794
        %1818 = vmatprep.subr.bf16.mxu0 0
        %1819 = vmatpush1.bf16.msra.mxu0 %v1795
        %1820 = vmatprep.subr.bf16.mxu0 0
        %1821 = vmatpush1.bf16.msra.mxu0 %v1796
        %1822 = vmatprep.subr.bf16.mxu0 0
        %1823 = vmatpush1.bf16.msra.mxu0 %v1797
        %1824 = vmatprep.subr.bf16.mxu0 0
        %1825 = vmatpush1.bf16.msra.mxu0 %v1798
        %1826 = vmatprep.subr.bf16.mxu0 0
        %1827 = vmatpush1.bf16.msra.mxu0 %v1799
        %1828 = vmatprep.subr.bf16.mxu0 0
        %1829 = vmatpush1.bf16.msra.mxu0 %v389
        %1830 = vmatprep.subr.bf16.mxu0 0
        %1831 = vmatpush1.bf16.msra.mxu0 0
        %1832 = vmatprep.subr.bf16.mxu0 0
        %1833 = vmatpush1.bf16.msra.mxu0 0
        %1834 = vmatprep.subr.bf16.mxu0 0
        %1835 = vmatpush1.bf16.msra.mxu0 0
        %1836 = vmatprep.subr.bf16.mxu0 0
        %1837 = vmatpush1.bf16.msra.mxu0 0
        %1838 = vmatprep.subr.bf16.mxu0 0
        %1839 = vmatpush1.bf16.msra.mxu0 0
        %1840 = vmatprep.subr.bf16.mxu0 0
        %1841 = vmatpush1.bf16.msra.mxu0 0
        %1842 = vmatprep.subr.bf16.mxu0 0
        %1843 = vmatpush1.bf16.msra.mxu0 0
        %1844 = vmatprep.subr.bf16.mxu0 0
        %1845 = vmatpush1.bf16.msra.mxu0 0
        %1846 = vmatprep.subr.bf16.mxu0 0
        %1847 = vmatpush1.bf16.msra.mxu0 0
        %1848 = vmatprep.mubr.bf16.mxu0 0
        %1849 = vmatmul.mubr.bf16.gmra.mrb[0].mxu0 %v1811
        %v1850 = vpop.f32.mrb[0].mxu0
        %v1851 = vadd.f32 0.0, %v1850
        %v1852 = vpop.f32.mrb[0].mxu0
        %v1853 = vpop.f32.mrb[0].mxu0
        %v1854 = vadd.f32 0.0, %v1853
        %v1855 = vpop.f32.mrb[0].mxu0
        %1856 = vmatprep.mubr.bf16.mxu0 0
        %1857 = vmatmul.mubr.bf16.gmra.mrb[0].mxu0 %v1814
        %v1858 = vpop.f32.mrb[0].mxu0
        %v1859 = vadd.f32 0.0, %v1858
        %v1860 = vpop.f32.mrb[0].mxu0
        %v1861 = vpop.f32.mrb[0].mxu0
        %v1862 = vadd.f32 0.0, %v1861
        %v1863 = vpop.f32.mrb[0].mxu0
        %1864 = vdwg.mxu0
        %v1865 = vmax.f32 %v1851, 0.0
        %v1866 = vmax.f32 %v1854, 0.0
        %v1867 = vmax.f32 %v1859, 0.0
        %v1868 = vmax.f32 %v1862, 0.0
        %1869 = vrot.lane.b32.xlu0 %v1865, 1
        %v1870 = vpop.permute.xlu0 %1869
        %1871 = vrot.lane.b32.xlu0 %v1866, 1
        %v1872 = vpop.permute.xlu0 %1871
        %1873 = vrot.lane.b32.xlu0 %v1867, 1
        %v1874 = vpop.permute.xlu0 %1873
        %1875 = vrot.lane.b32.xlu0 %v1868, 1
        %v1876 = vpop.permute.xlu0 %1875
        %v1877 = vsel %vm1668, %v1870, 0.0
        %v1878 = vsel %vm1668, %v1872, 0.0
        %v1879 = vsel %vm1668, %v1874, 0.0
        %v1880 = vsel %vm1668, %v1876, 0.0
        %1881 = vrot.lane.b32.xlu0 %v1865, 127
        %v1882 = vpop.permute.xlu0 %1881
        %1883 = vrot.lane.b32.xlu0 %v1866, 127
        %v1884 = vpop.permute.xlu0 %1883
        %1885 = vrot.lane.b32.xlu0 %v1867, 127
        %v1886 = vpop.permute.xlu0 %1885
        %1887 = vrot.lane.b32.xlu0 %v1868, 127
        %v1888 = vpop.permute.xlu0 %1887
        %v1889 = vsel %vm1684, %v1882, 0.0
        %v1890 = vsel %vm1684, %v1884, 0.0
        %v1891 = vsel %vm1684, %v1886, 0.0
        %v1892 = vsel %vm1684, %v1888, 0.0
        %s1893 = scalar_lea.vmem %s1, 128
        %v1894 = vld [vmem:[%s1893] sm:$0xf]
        %v1895 = vld [vmem:[%s1893 + $0x4] sm:$0xf]
        %v1896 = vld [vmem:[%s1893 + $0x8] sm:$0xf]
        %v1897 = vld [vmem:[%s1893 + $0xc] sm:$0xf]
        %v1898 = vpack.c.bf16 %v1878, %v1877
        %v1899 = vpack.c.bf16 %v1880, %v1879
        %v1900 = vpack.c.bf16 %v1866, %v1865
        %v1901 = vpack.c.bf16 %v1868, %v1867
        %v1902 = vpack.c.bf16 %v1890, %v1889
        %v1903 = vpack.c.bf16 %v1892, %v1891
        %v1908 = vunpack.c.l.b16 %v1894
        %v1909 = vunpack.c.l.b16 %v1895
        %v1910 = vunpack.c.l.b16 %v1896
        %v1911 = vunpack.c.l.b16 %v1897
        %v1912 = vpack.c.b16 %v1909, %v1908
        %v1913 = vpack.c.b16 %v1911, %v1910
        %v1915 = vsel %vm378, %v1912, 0
        %v1918 = vsel %vm378, %v1913, 0
        %1920 = vmatprep.subr.bf16.mxu0 0
        %1921 = vmatpush1.bf16.msra.mxu0 %v1898
        %1922 = vmatprep.subr.bf16.mxu0 0
        %1923 = vmatpush1.bf16.msra.mxu0 %v1899
        %1924 = vmatprep.subr.bf16.mxu0 0
        %1925 = vmatpush1.bf16.msra.mxu0 %v1900
        %1926 = vmatprep.subr.bf16.mxu0 0
        %1927 = vmatpush1.bf16.msra.mxu0 %v1901
        %1928 = vmatprep.subr.bf16.mxu0 0
        %1929 = vmatpush1.bf16.msra.mxu0 %v1902
        %1930 = vmatprep.subr.bf16.mxu0 0
        %1931 = vmatpush1.bf16.msra.mxu0 %v1903
        %1932 = vmatprep.subr.bf16.mxu0 0
        %1933 = vmatpush1.bf16.msra.mxu0 %v389
        %1934 = vmatprep.subr.bf16.mxu0 0
        %1935 = vmatpush1.bf16.msra.mxu0 0
        %1936 = vmatprep.subr.bf16.mxu0 0
        %1937 = vmatpush1.bf16.msra.mxu0 0
        %1938 = vmatprep.subr.bf16.mxu0 0
        %1939 = vmatpush1.bf16.msra.mxu0 0
        %1940 = vmatprep.subr.bf16.mxu0 0
        %1941 = vmatpush1.bf16.msra.mxu0 0
        %1942 = vmatprep.subr.bf16.mxu0 0
        %1943 = vmatpush1.bf16.msra.mxu0 0
        %1944 = vmatprep.subr.bf16.mxu0 0
        %1945 = vmatpush1.bf16.msra.mxu0 0
        %1946 = vmatprep.subr.bf16.mxu0 0
        %1947 = vmatpush1.bf16.msra.mxu0 0
        %1948 = vmatprep.subr.bf16.mxu0 0
        %1949 = vmatpush1.bf16.msra.mxu0 0
        %1950 = vmatprep.subr.bf16.mxu0 0
        %1951 = vmatpush1.bf16.msra.mxu0 0
        %1952 = vmatprep.mubr.bf16.mxu0 0
        %1953 = vmatmul.mubr.bf16.gmra.mrb[0].mxu0 %v1915
        %v1954 = vpop.f32.mrb[0].mxu0
        %v1955 = vadd.f32 0.0, %v1954
        %v1956 = vpop.f32.mrb[0].mxu0
        %v1957 = vpop.f32.mrb[0].mxu0
        %v1958 = vpop.f32.mrb[0].mxu0
        %1959 = vmatprep.mubr.bf16.mxu0 0
        %1960 = vmatmul.mubr.bf16.gmra.mrb[0].mxu0 %v1918
        %v1961 = vpop.f32.mrb[0].mxu0
        %v1962 = vpop.f32.mrb[0].mxu0
        %v1963 = vpop.f32.mrb[0].mxu0
        %v1964 = vpop.f32.mrb[0].mxu0
        %1965 = vdwg.mxu0
        %1966 = vst [vmem:[%s235] sm:$0x7] %v1955
        %s1967 = sand.u32 %s138, 1
        %s1968 = scalar_lea.sflag [#allocation4], %s1967
        %s1969 = sand.u32 %s138, 1
        %s1970 = smul.addr %s1969, 4
        %s1971 = scalar_lea.vmem [#allocation5], %s1970
        // Predicated region
        $region45: #{tpu_custom_call.1} parent=39 // pred_check
          %p1972 = pneg %p148
        $region46: #{tpu_custom_call.1} parent=39 // pred_check_branch
          %1974 = sbr.rel (%p1972) target = $region48
        $region47: #{tpu_custom_call.1} parent=39 // pred_region
          %s1976 = ssub.s32 64, 64
          %1977 = vsyncadd %s1968, %s1976
          %s1978 = smul.addr %s20, 64
          %s1979 = scalar_lea.hbm %s5, %s1978
          %s1981 = sshll.u32 %s1971, 4
          %s1982 = int_to_ptr.vmem [resolvable:$true] %s1981
          %1984 = dma.vmem_to_hbm [thread:$0]  %s1982, 64, %s1979, %s1968
        $region48: #{tpu_custom_call.1} parent=39 // pred_fallthru
          _
      $region40: #{tpu_custom_call.1} parent=5 // pred_fallthru
        _
      %p1985 = scmp.le.s32.totalorder 2, %s15
      // Predicated region
      $region49: #{tpu_custom_call.1} parent=5 // pred_check
        %p1986 = pneg %p1985
      $region50: #{tpu_custom_call.1} parent=5 // pred_check_branch
        %1988 = sbr.rel (%p1986) target = $region52
      $region51: #{tpu_custom_call.1} parent=5 // pred_region
        %s1989 = ssub.s32 %s15, 2
        // Predicated region
        $region53: #{tpu_custom_call.1} parent=51 // pred_check
          %p1990 = pneg %p154
        $region54: #{tpu_custom_call.1} parent=51 // pred_check_branch
          %1992 = sbr.rel (%p1990) target = $region56
        $region55: #{tpu_custom_call.1} parent=51 // pred_region
          %s1993 = sand.u32 %s139, 1
          %s1994 = scalar_lea.sflag [#allocation4], %s1993
          %s1995 = sand.u32 %s139, 1
          %s1996 = smul.addr %s1995, 4
          %s1997 = scalar_lea.vmem [#allocation5], %s1996
          %1998 = dma.done %s1994, 64
        $region56: #{tpu_custom_call.1} parent=51 // pred_fallthru
          _
      $region52: #{tpu_custom_call.1} parent=5 // pred_fallthru
        _
    $region6: #{tpu_custom_call.1} parent=1 // loop_footer
      %s19 = sadd.s32 1, %s15
    $region7: #{tpu_custom_call.1} parent=1 // loop_footer_branch
      %14 = sbr.rel target = $region3
    $region8: #{tpu_custom_call.1} parent=1 // loop_exit
      _
    %1999 = vsyncpa [#allocation3], 1
    %s2000 = scalar_lea.sflag [#allocation3], 1
    %2001 = vsyncpa %s2000, 1
    %2002 = vsyncpa [#allocation4], 1
    %s2003 = scalar_lea.sflag [#allocation4], 1
    %2004 = vsyncpa %s2003, 1

</llo_original>
